<compile_context>
chip_gen: v7x
topology: tpu7x:2x2x1
jax: 0.10.0
libtpu: 0.0.40
codegen_flags: <defaults>
</compile_context>

<pallas_src>
import jax
import jax.numpy as jnp
from jax import lax
from jax.experimental import pallas as pl
from jax.experimental.pallas import tpu as pltpu

EPS = 1e-5
MXU_DTYPE = jnp.bfloat16     # conv matmul operand dtype (accumulation is f32)


# --------------------------------------------------------------------------- #
# in-kernel helpers (traced inside the fused Pallas kernel)
# --------------------------------------------------------------------------- #
def _shift_cols(x, d):
    """t[:, j] = x[:, j + d] if 0 <= j + d < N else 0.   d is a static int.

    Lowered to static lane slices + a zero block (XLU lane rotates, no VMEM
    round-trip).  Intra-batch boundary zeroing is handled by the caller's mask.
    """
    c, n = x.shape
    if d == 0:
        return x
    z = jnp.zeros((c, abs(d)), x.dtype)
    if d > 0:
        return jnp.concatenate([x[:, d:], z], axis=1)
    return jnp.concatenate([z, x[:, :n + d]], axis=1)


def _make_fused_kernel(n_res, batch, length):
    n_cols = batch * length          # lane-dense N = B*L

    def conv_same(x, w_ref, pad, l_pos):
        """PyTorch-style 'same' Conv1d (stride 1, no bias) via im2col.

        x      : (Cin, B*L) f32 value
        w_ref  : (Cout, K*Cin) VMEM ref, im2col layout (row = k*Cin + c), bf16
        l_pos  : (1, B*L) int32, position of each column inside its batch
        returns: (Cout, B*L) f32
        """
        cin = x.shape[0]
        cout, kcin = w_ref.shape
        k_taps = kcin // cin

        taps = []
        for k in range(k_taps):                       # static, unrolled taps
            d = k - pad                               # static shift offset
            t = _shift_cols(x, d)
            if d != 0:
                # zero the columns that would read across a batch boundary:
                # this realizes the per-batch 'same' zero padding.
                mask = (l_pos < (length - d)) if d > 0 else (l_pos >= (-d))
                t = jnp.where(mask, t, 0.0)
            taps.append(t)

        # im2col data matrix: contraction dim = K*Cin, lane-dense N = B*L.
        dmat = jnp.concatenate(taps, axis=0).astype(MXU_DTYPE)
        return jnp.dot(w_ref[...], dmat, preferred_element_type=jnp.float32)

    def bn(y, gamma, beta):
        """Training-mode BatchNorm1d (batch stats over batch & length),
        folded into a per-channel scale/shift (2 VALU ops/elem to apply)."""
        inv_n = 1.0 / n_cols
        mean = jnp.sum(y, axis=1, keepdims=True) * inv_n            # (C, 1)
        centered = y - mean
        var = jnp.sum(centered * centered, axis=1, keepdims=True) * inv_n
        scale = gamma * lax.rsqrt(var + EPS)                         # (C, 1)
        shift = beta - mean * scale
        return y * scale + shift

    def kernel(*refs):
        x_ref, lpos_ref = refs[0], refs[1]
        ws_ref, gs_ref, bs_ref = refs[2:5]
        res_refs = refs[5:5 + 6 * n_res]
        wh_ref, bh_ref = refs[5 + 6 * n_res:7 + 6 * n_res]
        o_ref = refs[7 + 6 * n_res]

        l_pos = lpos_ref[...]                        # (1, B*L), hoisted once

        # ---- stem: Conv1d(Cin, R, 11, 1, 5, bias=False) + BN + ReLU --------
        x = x_ref[...].astype(jnp.float32)
        x = conv_same(x, ws_ref, 5, l_pos)
        x = jnp.maximum(bn(x, gs_ref[...], bs_ref[...]), 0.0)

        # ---- residual blocks: x + BN(Conv(ReLU(BN(Conv(x))))) --------------
        for i in range(n_res):
            w1, g1, b1, w2, g2, b2 = res_refs[6 * i:6 * i + 6]
            h = conv_same(x, w1, 2, l_pos)
            h = jnp.maximum(bn(h, g1[...], b1[...]), 0.0)
            y = conv_same(h, w2, 2, l_pos)
            # conv2's bias is omitted: a per-channel constant is exactly
            # cancelled by the mean subtraction of the training-mode BN below.
            y = bn(y, g2[...], b2[...])
            x = x + y

        # ---- head: Conv1d(R, Cout, 3, 1, 1) with bias -----------------------
        y = conv_same(x, wh_ref, 1, l_pos)
        o_ref[...] = (y + bh_ref[...]).astype(o_ref.dtype)

    return kernel


# --------------------------------------------------------------------------- #
# wrapper: lane-dense (C, B*L) layout in/out, single fused pallas_call
# --------------------------------------------------------------------------- #
def resnet1d_forward(signal, params):
    """signal: (B, Cin, L) -> (B, Cout, L).  Whole network in one Pallas call."""
    B, Cin, L = signal.shape
    n_res = len(params["res_blocks"])
    Cout = params["head"]["w"].shape[0]
    N = B * L

    # lane-dense activation layout: (C, B*L)
    x2d = jnp.transpose(signal, (1, 0, 2)).reshape(Cin, N)
    # position of every column inside its own batch (for boundary masking)
    l_pos = (jnp.arange(N, dtype=jnp.int32) % L).reshape(1, N)

    inputs = [x2d, l_pos,
              params["stem"]["w"], params["stem"]["gamma"], params["stem"]["beta"]]
    for rb in params["res_blocks"]:
        inputs += [rb["w1"], rb["g1"], rb["b1"], rb["w2"], rb["g2"], rb["b2"]]
    inputs += [params["head"]["w"], params["head"]["bias"]]

    out2d = pl.pallas_call(
        _make_fused_kernel(n_res, B, L),
        out_shape=jax.ShapeDtypeStruct((Cout, N), signal.dtype),
    )(*inputs)

    return jnp.transpose(out2d.reshape(Cout, B, L), (1, 0, 2))


# --------------------------------------------------------------------------- #
# parameter init (deterministic, PyTorch-like defaults); conv weights are
# stored host-side in im2col layout (Cout, K*Cin), row index = k*Cin + c, bf16.
# --------------------------------------------------------------------------- #
def _conv_weight(key, cout, cin, k):
    bound = 1.0 / float(cin * k) ** 0.5
    w = jax.random.uniform(key, (cout, cin, k), jnp.float32, -bound, bound)
    return jnp.transpose(w, (0, 2, 1)).reshape(cout, k * cin).astype(MXU_DTYPE)


def _conv_bias(key, cout, cin, k):
    bound = 1.0 / float(cin * k) ** 0.5
    return jax.random.uniform(key, (cout, 1), jnp.float32, -bound, bound)


def init_resnet1d_params(key, n_channel_in, n_channel_out, r_channels, n_length):
    n_res = n_length - 2
    keys = jax.random.split(key, 2 * n_res + 4)
    ki = iter(range(len(keys)))
    params = {
        "stem": {
            "w": _conv_weight(keys[next(ki)], r_channels, n_channel_in, 11),
            "gamma": jnp.ones((r_channels, 1), jnp.float32),   # BN default init
            "beta": jnp.zeros((r_channels, 1), jnp.float32),
        },
        "res_blocks": [],
    }
    for _ in range(n_res):
        params["res_blocks"].append({
            "w1": _conv_weight(keys[next(ki)], r_channels, r_channels, 5),
            "g1": jnp.ones((r_channels, 1), jnp.float32),
            "b1": jnp.zeros((r_channels, 1), jnp.float32),
            "w2": _conv_weight(keys[next(ki)], r_channels, r_channels, 5),
            # conv2 bias not materialised: exactly cancelled by the BN after it.
            "g2": jnp.ones((r_channels, 1), jnp.float32),
            "b2": jnp.zeros((r_channels, 1), jnp.float32),
        })
    params["head"] = {
        "w": _conv_weight(keys[next(ki)], n_channel_out, r_channels, 3),
        "bias": _conv_bias(keys[next(ki)], n_channel_out, r_channels, 3),
    }
    return params


# --------------------------------------------------------------------------- #
if __name__ == "__main__":
    B = 2              # batch
    C_IN = 4           # n_channel_in
    C_OUT = 4          # n_channel_out
    R = 32             # r_channels
    N_LENGTH = 4       # number of blocks (stem + 2 residual blocks + head)
    L = 16             # signal length

    key = jax.random.PRNGKey(0)
    k_param, k_input = jax.random.split(key)

    params = init_resnet1d_params(k_param, C_IN, C_OUT, R, N_LENGTH)
    signal = jax.random.normal(k_input, (B, C_IN, L), jnp.float32)

    fwd = jax.jit(resnet1d_forward)
    out = jax.block_until_ready(fwd(signal, params))

    assert out.shape == (B, C_OUT, L), out.shape
    assert bool(jnp.all(jnp.isfinite(out)))
    print("KERNEL_OK")
</pallas_src>

<mosaic_0001>
module attributes {stable_mosaic.version = 11 : i64} {
  func.func @kernel(%arg0: memref<4x32xf32, #tpu.memory_space<vmem>>, %arg1: memref<1x32xi32, #tpu.memory_space<vmem>>, %arg2: memref<32x44xbf16, #tpu.memory_space<vmem>>, %arg3: memref<32x1xf32, #tpu.memory_space<vmem>>, %arg4: memref<32x1xf32, #tpu.memory_space<vmem>>, %arg5: memref<32x160xbf16, #tpu.memory_space<vmem>>, %arg6: memref<32x1xf32, #tpu.memory_space<vmem>>, %arg7: memref<32x1xf32, #tpu.memory_space<vmem>>, %arg8: memref<32x160xbf16, #tpu.memory_space<vmem>>, %arg9: memref<32x1xf32, #tpu.memory_space<vmem>>, %arg10: memref<32x1xf32, #tpu.memory_space<vmem>>, %arg11: memref<32x160xbf16, #tpu.memory_space<vmem>>, %arg12: memref<32x1xf32, #tpu.memory_space<vmem>>, %arg13: memref<32x1xf32, #tpu.memory_space<vmem>>, %arg14: memref<32x160xbf16, #tpu.memory_space<vmem>>, %arg15: memref<32x1xf32, #tpu.memory_space<vmem>>, %arg16: memref<32x1xf32, #tpu.memory_space<vmem>>, %arg17: memref<4x96xbf16, #tpu.memory_space<vmem>>, %arg18: memref<4x1xf32, #tpu.memory_space<vmem>>, %arg19: memref<4x32xf32, #tpu.memory_space<vmem>>) attributes {dimension_semantics = [], scalar_prefetch = 0 : i64, scratch_operands = 0 : i64, tpu.core_type = #tpu.core_type<tc>} {
    %c0 = arith.constant 0 : index
    %c0_0 = arith.constant 0 : index
    %0 = vector.load %arg1[%c0, %c0_0] : memref<1x32xi32, #tpu.memory_space<vmem>>, vector<1x32xi32>
    %c0_1 = arith.constant 0 : index
    %c0_2 = arith.constant 0 : index
    %1 = vector.load %arg0[%c0_1, %c0_2] : memref<4x32xf32, #tpu.memory_space<vmem>>, vector<4x32xf32>
    %cst = arith.constant 0.000000e+00 : f32
    %2 = vector.broadcast %cst : f32 to vector<4x5xf32>
    %3 = vector.extract_strided_slice %1 {offsets = [0, 0], sizes = [4, 27], strides = [1, 1]} : vector<4x32xf32> to vector<4x27xf32>
    %4 = tpu.concatenate %2, %3 in 1 : vector<4x5xf32>, vector<4x27xf32> -> vector<4x32xf32>
    %c5_i32 = arith.constant 5 : i32
    %5 = vector.broadcast %c5_i32 : i32 to vector<1x32xi32>
    %6 = arith.cmpi sge, %0, %5 : vector<1x32xi32>
    %cst_3 = arith.constant 0.000000e+00 : f32
    %7 = vector.shape_cast %6 : vector<1x32xi1> to vector<1x32xi1>
    %8 = vector.broadcast %7 : vector<1x32xi1> to vector<4x32xi1>
    %9 = vector.broadcast %cst_3 : f32 to vector<4x32xf32>
    %10 = arith.select %8, %4, %9 : vector<4x32xi1>, vector<4x32xf32>
    %cst_4 = arith.constant 0.000000e+00 : f32
    %11 = vector.broadcast %cst_4 : f32 to vector<4x4xf32>
    %12 = vector.extract_strided_slice %1 {offsets = [0, 0], sizes = [4, 28], strides = [1, 1]} : vector<4x32xf32> to vector<4x28xf32>
    %13 = tpu.concatenate %11, %12 in 1 : vector<4x4xf32>, vector<4x28xf32> -> vector<4x32xf32>
    %c4_i32 = arith.constant 4 : i32
    %14 = vector.broadcast %c4_i32 : i32 to vector<1x32xi32>
    %15 = arith.cmpi sge, %0, %14 : vector<1x32xi32>
    %cst_5 = arith.constant 0.000000e+00 : f32
    %16 = vector.shape_cast %15 : vector<1x32xi1> to vector<1x32xi1>
    %17 = vector.broadcast %16 : vector<1x32xi1> to vector<4x32xi1>
    %18 = vector.broadcast %cst_5 : f32 to vector<4x32xf32>
    %19 = arith.select %17, %13, %18 : vector<4x32xi1>, vector<4x32xf32>
    %cst_6 = arith.constant 0.000000e+00 : f32
    %20 = vector.broadcast %cst_6 : f32 to vector<4x3xf32>
    %21 = vector.extract_strided_slice %1 {offsets = [0, 0], sizes = [4, 29], strides = [1, 1]} : vector<4x32xf32> to vector<4x29xf32>
    %22 = tpu.concatenate %20, %21 in 1 : vector<4x3xf32>, vector<4x29xf32> -> vector<4x32xf32>
    %c3_i32 = arith.constant 3 : i32
    %23 = vector.broadcast %c3_i32 : i32 to vector<1x32xi32>
    %24 = arith.cmpi sge, %0, %23 : vector<1x32xi32>
    %cst_7 = arith.constant 0.000000e+00 : f32
    %25 = vector.shape_cast %24 : vector<1x32xi1> to vector<1x32xi1>
    %26 = vector.broadcast %25 : vector<1x32xi1> to vector<4x32xi1>
    %27 = vector.broadcast %cst_7 : f32 to vector<4x32xf32>
    %28 = arith.select %26, %22, %27 : vector<4x32xi1>, vector<4x32xf32>
    %cst_8 = arith.constant 0.000000e+00 : f32
    %29 = vector.broadcast %cst_8 : f32 to vector<4x2xf32>
    %30 = vector.extract_strided_slice %1 {offsets = [0, 0], sizes = [4, 30], strides = [1, 1]} : vector<4x32xf32> to vector<4x30xf32>
    %31 = tpu.concatenate %29, %30 in 1 : vector<4x2xf32>, vector<4x30xf32> -> vector<4x32xf32>
    %c2_i32 = arith.constant 2 : i32
    %32 = vector.broadcast %c2_i32 : i32 to vector<1x32xi32>
    %33 = arith.cmpi sge, %0, %32 : vector<1x32xi32>
    %cst_9 = arith.constant 0.000000e+00 : f32
    %34 = vector.shape_cast %33 : vector<1x32xi1> to vector<1x32xi1>
    %35 = vector.broadcast %34 : vector<1x32xi1> to vector<4x32xi1>
    %36 = vector.broadcast %cst_9 : f32 to vector<4x32xf32>
    %37 = arith.select %35, %31, %36 : vector<4x32xi1>, vector<4x32xf32>
    %cst_10 = arith.constant 0.000000e+00 : f32
    %38 = vector.broadcast %cst_10 : f32 to vector<4x1xf32>
    %39 = vector.extract_strided_slice %1 {offsets = [0, 0], sizes = [4, 31], strides = [1, 1]} : vector<4x32xf32> to vector<4x31xf32>
    %40 = tpu.concatenate %38, %39 in 1 : vector<4x1xf32>, vector<4x31xf32> -> vector<4x32xf32>
    %c1_i32 = arith.constant 1 : i32
    %41 = vector.broadcast %c1_i32 : i32 to vector<1x32xi32>
    %42 = arith.cmpi sge, %0, %41 : vector<1x32xi32>
    %cst_11 = arith.constant 0.000000e+00 : f32
    %43 = vector.shape_cast %42 : vector<1x32xi1> to vector<1x32xi1>
    %44 = vector.broadcast %43 : vector<1x32xi1> to vector<4x32xi1>
    %45 = vector.broadcast %cst_11 : f32 to vector<4x32xf32>
    %46 = arith.select %44, %40, %45 : vector<4x32xi1>, vector<4x32xf32>
    %cst_12 = arith.constant 0.000000e+00 : f32
    %47 = vector.broadcast %cst_12 : f32 to vector<4x1xf32>
    %48 = vector.extract_strided_slice %1 {offsets = [0, 1], sizes = [4, 31], strides = [1, 1]} : vector<4x32xf32> to vector<4x31xf32>
    %49 = tpu.concatenate %48, %47 in 1 : vector<4x31xf32>, vector<4x1xf32> -> vector<4x32xf32>
    %c15_i32 = arith.constant 15 : i32
    %50 = vector.broadcast %c15_i32 : i32 to vector<1x32xi32>
    %51 = arith.cmpi slt, %0, %50 : vector<1x32xi32>
    %cst_13 = arith.constant 0.000000e+00 : f32
    %52 = vector.shape_cast %51 : vector<1x32xi1> to vector<1x32xi1>
    %53 = vector.broadcast %52 : vector<1x32xi1> to vector<4x32xi1>
    %54 = vector.broadcast %cst_13 : f32 to vector<4x32xf32>
    %55 = arith.select %53, %49, %54 : vector<4x32xi1>, vector<4x32xf32>
    %cst_14 = arith.constant 0.000000e+00 : f32
    %56 = vector.broadcast %cst_14 : f32 to vector<4x2xf32>
    %57 = vector.extract_strided_slice %1 {offsets = [0, 2], sizes = [4, 30], strides = [1, 1]} : vector<4x32xf32> to vector<4x30xf32>
    %58 = tpu.concatenate %57, %56 in 1 : vector<4x30xf32>, vector<4x2xf32> -> vector<4x32xf32>
    %c14_i32 = arith.constant 14 : i32
    %59 = vector.broadcast %c14_i32 : i32 to vector<1x32xi32>
    %60 = arith.cmpi slt, %0, %59 : vector<1x32xi32>
    %cst_15 = arith.constant 0.000000e+00 : f32
    %61 = vector.shape_cast %60 : vector<1x32xi1> to vector<1x32xi1>
    %62 = vector.broadcast %61 : vector<1x32xi1> to vector<4x32xi1>
    %63 = vector.broadcast %cst_15 : f32 to vector<4x32xf32>
    %64 = arith.select %62, %58, %63 : vector<4x32xi1>, vector<4x32xf32>
    %cst_16 = arith.constant 0.000000e+00 : f32
    %65 = vector.broadcast %cst_16 : f32 to vector<4x3xf32>
    %66 = vector.extract_strided_slice %1 {offsets = [0, 3], sizes = [4, 29], strides = [1, 1]} : vector<4x32xf32> to vector<4x29xf32>
    %67 = tpu.concatenate %66, %65 in 1 : vector<4x29xf32>, vector<4x3xf32> -> vector<4x32xf32>
    %c13_i32 = arith.constant 13 : i32
    %68 = vector.broadcast %c13_i32 : i32 to vector<1x32xi32>
    %69 = arith.cmpi slt, %0, %68 : vector<1x32xi32>
    %cst_17 = arith.constant 0.000000e+00 : f32
    %70 = vector.shape_cast %69 : vector<1x32xi1> to vector<1x32xi1>
    %71 = vector.broadcast %70 : vector<1x32xi1> to vector<4x32xi1>
    %72 = vector.broadcast %cst_17 : f32 to vector<4x32xf32>
    %73 = arith.select %71, %67, %72 : vector<4x32xi1>, vector<4x32xf32>
    %cst_18 = arith.constant 0.000000e+00 : f32
    %74 = vector.broadcast %cst_18 : f32 to vector<4x4xf32>
    %75 = vector.extract_strided_slice %1 {offsets = [0, 4], sizes = [4, 28], strides = [1, 1]} : vector<4x32xf32> to vector<4x28xf32>
    %76 = tpu.concatenate %75, %74 in 1 : vector<4x28xf32>, vector<4x4xf32> -> vector<4x32xf32>
    %c12_i32 = arith.constant 12 : i32
    %77 = vector.broadcast %c12_i32 : i32 to vector<1x32xi32>
    %78 = arith.cmpi slt, %0, %77 : vector<1x32xi32>
    %cst_19 = arith.constant 0.000000e+00 : f32
    %79 = vector.shape_cast %78 : vector<1x32xi1> to vector<1x32xi1>
    %80 = vector.broadcast %79 : vector<1x32xi1> to vector<4x32xi1>
    %81 = vector.broadcast %cst_19 : f32 to vector<4x32xf32>
    %82 = arith.select %80, %76, %81 : vector<4x32xi1>, vector<4x32xf32>
    %cst_20 = arith.constant 0.000000e+00 : f32
    %83 = vector.broadcast %cst_20 : f32 to vector<4x5xf32>
    %84 = vector.extract_strided_slice %1 {offsets = [0, 5], sizes = [4, 27], strides = [1, 1]} : vector<4x32xf32> to vector<4x27xf32>
    %85 = tpu.concatenate %84, %83 in 1 : vector<4x27xf32>, vector<4x5xf32> -> vector<4x32xf32>
    %c11_i32 = arith.constant 11 : i32
    %86 = vector.broadcast %c11_i32 : i32 to vector<1x32xi32>
    %87 = arith.cmpi slt, %0, %86 : vector<1x32xi32>
    %cst_21 = arith.constant 0.000000e+00 : f32
    %88 = vector.shape_cast %87 : vector<1x32xi1> to vector<1x32xi1>
    %89 = vector.broadcast %88 : vector<1x32xi1> to vector<4x32xi1>
    %90 = vector.broadcast %cst_21 : f32 to vector<4x32xf32>
    %91 = arith.select %89, %85, %90 : vector<4x32xi1>, vector<4x32xf32>
    %92 = tpu.concatenate %10, %19, %28, %37, %46, %1, %55, %64, %73, %82, %91 in 0 : vector<4x32xf32>, vector<4x32xf32>, vector<4x32xf32>, vector<4x32xf32>, vector<4x32xf32>, vector<4x32xf32>, vector<4x32xf32>, vector<4x32xf32>, vector<4x32xf32>, vector<4x32xf32>, vector<4x32xf32> -> vector<44x32xf32>
    %93 = arith.truncf %92 : vector<44x32xf32> to vector<44x32xbf16>
    %c0_22 = arith.constant 0 : index
    %c0_23 = arith.constant 0 : index
    %94 = vector.load %arg2[%c0_22, %c0_23] : memref<32x44xbf16, #tpu.memory_space<vmem>>, vector<32x44xbf16>
    %cst_24 = arith.constant dense<0.000000e+00> : vector<32x32xf32>
    %95 = tpu.matmul %94, %93, %cst_24 {dimension_numbers = #tpu.dot_dimension_numbers<[1], [0], [0], [1], [0, 0, 1, 1], [], []>} : vector<32x44xbf16>, vector<44x32xbf16>, vector<32x32xf32> -> vector<32x32xf32>
    %c0_25 = arith.constant 0 : index
    %c0_26 = arith.constant 0 : index
    %96 = vector.load %arg3[%c0_25, %c0_26] : memref<32x1xf32, #tpu.memory_space<vmem>>, vector<32x1xf32>
    %c0_27 = arith.constant 0 : index
    %c0_28 = arith.constant 0 : index
    %97 = vector.load %arg4[%c0_27, %c0_28] : memref<32x1xf32, #tpu.memory_space<vmem>>, vector<32x1xf32>
    %cst_29 = arith.constant dense<0.000000e+00> : vector<32xf32>
    %98 = vector.multi_reduction <add>, %95, %cst_29 [1] : vector<32x32xf32> to vector<32xf32>
    %99 = vector.shape_cast %98 : vector<32xf32> to vector<32x1xf32>
    %cst_30 = arith.constant 3.125000e-02 : f32
    %100 = vector.broadcast %cst_30 : f32 to vector<32x1xf32>
    %101 = arith.mulf %99, %100 : vector<32x1xf32>
    %102 = vector.broadcast %101 : vector<32x1xf32> to vector<32x32xf32>
    %103 = arith.subf %95, %102 : vector<32x32xf32>
    %104 = arith.mulf %103, %103 : vector<32x32xf32>
    %cst_31 = arith.constant dense<0.000000e+00> : vector<32xf32>
    %105 = vector.multi_reduction <add>, %104, %cst_31 [1] : vector<32x32xf32> to vector<32xf32>
    %106 = vector.shape_cast %105 : vector<32xf32> to vector<32x1xf32>
    %cst_32 = arith.constant 3.125000e-02 : f32
    %107 = vector.broadcast %cst_32 : f32 to vector<32x1xf32>
    %108 = arith.mulf %106, %107 : vector<32x1xf32>
    %cst_33 = arith.constant 9.99999974E-6 : f32
    %109 = vector.broadcast %cst_33 : f32 to vector<32x1xf32>
    %110 = arith.addf %108, %109 : vector<32x1xf32>
    %111 = math.rsqrt %110 : vector<32x1xf32>
    %112 = arith.mulf %96, %111 : vector<32x1xf32>
    %113 = arith.mulf %101, %112 : vector<32x1xf32>
    %114 = arith.subf %97, %113 : vector<32x1xf32>
    %115 = vector.broadcast %112 : vector<32x1xf32> to vector<32x32xf32>
    %116 = arith.mulf %95, %115 : vector<32x32xf32>
    %117 = vector.broadcast %114 : vector<32x1xf32> to vector<32x32xf32>
    %118 = arith.addf %116, %117 : vector<32x32xf32>
    %cst_34 = arith.constant 0.000000e+00 : f32
    %119 = vector.broadcast %cst_34 : f32 to vector<32x32xf32>
    %120 = arith.maximumf %118, %119 : vector<32x32xf32>
    %cst_35 = arith.constant 0.000000e+00 : f32
    %121 = vector.broadcast %cst_35 : f32 to vector<32x2xf32>
    %122 = vector.extract_strided_slice %120 {offsets = [0, 0], sizes = [32, 30], strides = [1, 1]} : vector<32x32xf32> to vector<32x30xf32>
    %123 = tpu.concatenate %121, %122 in 1 : vector<32x2xf32>, vector<32x30xf32> -> vector<32x32xf32>
    %c2_i32_36 = arith.constant 2 : i32
    %124 = vector.broadcast %c2_i32_36 : i32 to vector<1x32xi32>
    %125 = arith.cmpi sge, %0, %124 : vector<1x32xi32>
    %cst_37 = arith.constant 0.000000e+00 : f32
    %126 = vector.shape_cast %125 : vector<1x32xi1> to vector<1x32xi1>
    %127 = vector.broadcast %126 : vector<1x32xi1> to vector<32x32xi1>
    %128 = vector.broadcast %cst_37 : f32 to vector<32x32xf32>
    %129 = arith.select %127, %123, %128 : vector<32x32xi1>, vector<32x32xf32>
    %cst_38 = arith.constant 0.000000e+00 : f32
    %130 = vector.broadcast %cst_38 : f32 to vector<32x1xf32>
    %131 = vector.extract_strided_slice %120 {offsets = [0, 0], sizes = [32, 31], strides = [1, 1]} : vector<32x32xf32> to vector<32x31xf32>
    %132 = tpu.concatenate %130, %131 in 1 : vector<32x1xf32>, vector<32x31xf32> -> vector<32x32xf32>
    %c1_i32_39 = arith.constant 1 : i32
    %133 = vector.broadcast %c1_i32_39 : i32 to vector<1x32xi32>
    %134 = arith.cmpi sge, %0, %133 : vector<1x32xi32>
    %cst_40 = arith.constant 0.000000e+00 : f32
    %135 = vector.shape_cast %134 : vector<1x32xi1> to vector<1x32xi1>
    %136 = vector.broadcast %135 : vector<1x32xi1> to vector<32x32xi1>
    %137 = vector.broadcast %cst_40 : f32 to vector<32x32xf32>
    %138 = arith.select %136, %132, %137 : vector<32x32xi1>, vector<32x32xf32>
    %cst_41 = arith.constant 0.000000e+00 : f32
    %139 = vector.broadcast %cst_41 : f32 to vector<32x1xf32>
    %140 = vector.extract_strided_slice %120 {offsets = [0, 1], sizes = [32, 31], strides = [1, 1]} : vector<32x32xf32> to vector<32x31xf32>
    %141 = tpu.concatenate %140, %139 in 1 : vector<32x31xf32>, vector<32x1xf32> -> vector<32x32xf32>
    %c15_i32_42 = arith.constant 15 : i32
    %142 = vector.broadcast %c15_i32_42 : i32 to vector<1x32xi32>
    %143 = arith.cmpi slt, %0, %142 : vector<1x32xi32>
    %cst_43 = arith.constant 0.000000e+00 : f32
    %144 = vector.shape_cast %143 : vector<1x32xi1> to vector<1x32xi1>
    %145 = vector.broadcast %144 : vector<1x32xi1> to vector<32x32xi1>
    %146 = vector.broadcast %cst_43 : f32 to vector<32x32xf32>
    %147 = arith.select %145, %141, %146 : vector<32x32xi1>, vector<32x32xf32>
    %cst_44 = arith.constant 0.000000e+00 : f32
    %148 = vector.broadcast %cst_44 : f32 to vector<32x2xf32>
    %149 = vector.extract_strided_slice %120 {offsets = [0, 2], sizes = [32, 30], strides = [1, 1]} : vector<32x32xf32> to vector<32x30xf32>
    %150 = tpu.concatenate %149, %148 in 1 : vector<32x30xf32>, vector<32x2xf32> -> vector<32x32xf32>
    %c14_i32_45 = arith.constant 14 : i32
    %151 = vector.broadcast %c14_i32_45 : i32 to vector<1x32xi32>
    %152 = arith.cmpi slt, %0, %151 : vector<1x32xi32>
    %cst_46 = arith.constant 0.000000e+00 : f32
    %153 = vector.shape_cast %152 : vector<1x32xi1> to vector<1x32xi1>
    %154 = vector.broadcast %153 : vector<1x32xi1> to vector<32x32xi1>
    %155 = vector.broadcast %cst_46 : f32 to vector<32x32xf32>
    %156 = arith.select %154, %150, %155 : vector<32x32xi1>, vector<32x32xf32>
    %157 = tpu.concatenate %129, %138, %120, %147, %156 in 0 : vector<32x32xf32>, vector<32x32xf32>, vector<32x32xf32>, vector<32x32xf32>, vector<32x32xf32> -> vector<160x32xf32>
    %158 = arith.truncf %157 : vector<160x32xf32> to vector<160x32xbf16>
    %c0_47 = arith.constant 0 : index
    %c0_48 = arith.constant 0 : index
    %159 = vector.load %arg5[%c0_47, %c0_48] : memref<32x160xbf16, #tpu.memory_space<vmem>>, vector<32x160xbf16>
    %cst_49 = arith.constant dense<0.000000e+00> : vector<32x32xf32>
    %160 = tpu.matmul %159, %158, %cst_49 {dimension_numbers = #tpu.dot_dimension_numbers<[1], [0], [0], [1], [0, 0, 1, 1], [], []>} : vector<32x160xbf16>, vector<160x32xbf16>, vector<32x32xf32> -> vector<32x32xf32>
    %c0_50 = arith.constant 0 : index
    %c0_51 = arith.constant 0 : index
    %161 = vector.load %arg6[%c0_50, %c0_51] : memref<32x1xf32, #tpu.memory_space<vmem>>, vector<32x1xf32>
    %c0_52 = arith.constant 0 : index
    %c0_53 = arith.constant 0 : index
    %162 = vector.load %arg7[%c0_52, %c0_53] : memref<32x1xf32, #tpu.memory_space<vmem>>, vector<32x1xf32>
    %cst_54 = arith.constant dense<0.000000e+00> : vector<32xf32>
    %163 = vector.multi_reduction <add>, %160, %cst_54 [1] : vector<32x32xf32> to vector<32xf32>
    %164 = vector.shape_cast %163 : vector<32xf32> to vector<32x1xf32>
    %cst_55 = arith.constant 3.125000e-02 : f32
    %165 = vector.broadcast %cst_55 : f32 to vector<32x1xf32>
    %166 = arith.mulf %164, %165 : vector<32x1xf32>
    %167 = vector.broadcast %166 : vector<32x1xf32> to vector<32x32xf32>
    %168 = arith.subf %160, %167 : vector<32x32xf32>
    %169 = arith.mulf %168, %168 : vector<32x32xf32>
    %cst_56 = arith.constant dense<0.000000e+00> : vector<32xf32>
    %170 = vector.multi_reduction <add>, %169, %cst_56 [1] : vector<32x32xf32> to vector<32xf32>
    %171 = vector.shape_cast %170 : vector<32xf32> to vector<32x1xf32>
    %cst_57 = arith.constant 3.125000e-02 : f32
    %172 = vector.broadcast %cst_57 : f32 to vector<32x1xf32>
    %173 = arith.mulf %171, %172 : vector<32x1xf32>
    %cst_58 = arith.constant 9.99999974E-6 : f32
    %174 = vector.broadcast %cst_58 : f32 to vector<32x1xf32>
    %175 = arith.addf %173, %174 : vector<32x1xf32>
    %176 = math.rsqrt %175 : vector<32x1xf32>
    %177 = arith.mulf %161, %176 : vector<32x1xf32>
    %178 = arith.mulf %166, %177 : vector<32x1xf32>
    %179 = arith.subf %162, %178 : vector<32x1xf32>
    %180 = vector.broadcast %177 : vector<32x1xf32> to vector<32x32xf32>
    %181 = arith.mulf %160, %180 : vector<32x32xf32>
    %182 = vector.broadcast %179 : vector<32x1xf32> to vector<32x32xf32>
    %183 = arith.addf %181, %182 : vector<32x32xf32>
    %cst_59 = arith.constant 0.000000e+00 : f32
    %184 = vector.broadcast %cst_59 : f32 to vector<32x32xf32>
    %185 = arith.maximumf %183, %184 : vector<32x32xf32>
    %cst_60 = arith.constant 0.000000e+00 : f32
    %186 = vector.broadcast %cst_60 : f32 to vector<32x2xf32>
    %187 = vector.extract_strided_slice %185 {offsets = [0, 0], sizes = [32, 30], strides = [1, 1]} : vector<32x32xf32> to vector<32x30xf32>
    %188 = tpu.concatenate %186, %187 in 1 : vector<32x2xf32>, vector<32x30xf32> -> vector<32x32xf32>
    %c2_i32_61 = arith.constant 2 : i32
    %189 = vector.broadcast %c2_i32_61 : i32 to vector<1x32xi32>
    %190 = arith.cmpi sge, %0, %189 : vector<1x32xi32>
    %cst_62 = arith.constant 0.000000e+00 : f32
    %191 = vector.shape_cast %190 : vector<1x32xi1> to vector<1x32xi1>
    %192 = vector.broadcast %191 : vector<1x32xi1> to vector<32x32xi1>
    %193 = vector.broadcast %cst_62 : f32 to vector<32x32xf32>
    %194 = arith.select %192, %188, %193 : vector<32x32xi1>, vector<32x32xf32>
    %cst_63 = arith.constant 0.000000e+00 : f32
    %195 = vector.broadcast %cst_63 : f32 to vector<32x1xf32>
    %196 = vector.extract_strided_slice %185 {offsets = [0, 0], sizes = [32, 31], strides = [1, 1]} : vector<32x32xf32> to vector<32x31xf32>
    %197 = tpu.concatenate %195, %196 in 1 : vector<32x1xf32>, vector<32x31xf32> -> vector<32x32xf32>
    %c1_i32_64 = arith.constant 1 : i32
    %198 = vector.broadcast %c1_i32_64 : i32 to vector<1x32xi32>
    %199 = arith.cmpi sge, %0, %198 : vector<1x32xi32>
    %cst_65 = arith.constant 0.000000e+00 : f32
    %200 = vector.shape_cast %199 : vector<1x32xi1> to vector<1x32xi1>
    %201 = vector.broadcast %200 : vector<1x32xi1> to vector<32x32xi1>
    %202 = vector.broadcast %cst_65 : f32 to vector<32x32xf32>
    %203 = arith.select %201, %197, %202 : vector<32x32xi1>, vector<32x32xf32>
    %cst_66 = arith.constant 0.000000e+00 : f32
    %204 = vector.broadcast %cst_66 : f32 to vector<32x1xf32>
    %205 = vector.extract_strided_slice %185 {offsets = [0, 1], sizes = [32, 31], strides = [1, 1]} : vector<32x32xf32> to vector<32x31xf32>
    %206 = tpu.concatenate %205, %204 in 1 : vector<32x31xf32>, vector<32x1xf32> -> vector<32x32xf32>
    %c15_i32_67 = arith.constant 15 : i32
    %207 = vector.broadcast %c15_i32_67 : i32 to vector<1x32xi32>
    %208 = arith.cmpi slt, %0, %207 : vector<1x32xi32>
    %cst_68 = arith.constant 0.000000e+00 : f32
    %209 = vector.shape_cast %208 : vector<1x32xi1> to vector<1x32xi1>
    %210 = vector.broadcast %209 : vector<1x32xi1> to vector<32x32xi1>
    %211 = vector.broadcast %cst_68 : f32 to vector<32x32xf32>
    %212 = arith.select %210, %206, %211 : vector<32x32xi1>, vector<32x32xf32>
    %cst_69 = arith.constant 0.000000e+00 : f32
    %213 = vector.broadcast %cst_69 : f32 to vector<32x2xf32>
    %214 = vector.extract_strided_slice %185 {offsets = [0, 2], sizes = [32, 30], strides = [1, 1]} : vector<32x32xf32> to vector<32x30xf32>
    %215 = tpu.concatenate %214, %213 in 1 : vector<32x30xf32>, vector<32x2xf32> -> vector<32x32xf32>
    %c14_i32_70 = arith.constant 14 : i32
    %216 = vector.broadcast %c14_i32_70 : i32 to vector<1x32xi32>
    %217 = arith.cmpi slt, %0, %216 : vector<1x32xi32>
    %cst_71 = arith.constant 0.000000e+00 : f32
    %218 = vector.shape_cast %217 : vector<1x32xi1> to vector<1x32xi1>
    %219 = vector.broadcast %218 : vector<1x32xi1> to vector<32x32xi1>
    %220 = vector.broadcast %cst_71 : f32 to vector<32x32xf32>
    %221 = arith.select %219, %215, %220 : vector<32x32xi1>, vector<32x32xf32>
    %222 = tpu.concatenate %194, %203, %185, %212, %221 in 0 : vector<32x32xf32>, vector<32x32xf32>, vector<32x32xf32>, vector<32x32xf32>, vector<32x32xf32> -> vector<160x32xf32>
    %223 = arith.truncf %222 : vector<160x32xf32> to vector<160x32xbf16>
    %c0_72 = arith.constant 0 : index
    %c0_73 = arith.constant 0 : index
    %224 = vector.load %arg8[%c0_72, %c0_73] : memref<32x160xbf16, #tpu.memory_space<vmem>>, vector<32x160xbf16>
    %cst_74 = arith.constant dense<0.000000e+00> : vector<32x32xf32>
    %225 = tpu.matmul %224, %223, %cst_74 {dimension_numbers = #tpu.dot_dimension_numbers<[1], [0], [0], [1], [0, 0, 1, 1], [], []>} : vector<32x160xbf16>, vector<160x32xbf16>, vector<32x32xf32> -> vector<32x32xf32>
    %c0_75 = arith.constant 0 : index
    %c0_76 = arith.constant 0 : index
    %226 = vector.load %arg9[%c0_75, %c0_76] : memref<32x1xf32, #tpu.memory_space<vmem>>, vector<32x1xf32>
    %c0_77 = arith.constant 0 : index
    %c0_78 = arith.constant 0 : index
    %227 = vector.load %arg10[%c0_77, %c0_78] : memref<32x1xf32, #tpu.memory_space<vmem>>, vector<32x1xf32>
    %cst_79 = arith.constant dense<0.000000e+00> : vector<32xf32>
    %228 = vector.multi_reduction <add>, %225, %cst_79 [1] : vector<32x32xf32> to vector<32xf32>
    %229 = vector.shape_cast %228 : vector<32xf32> to vector<32x1xf32>
    %cst_80 = arith.constant 3.125000e-02 : f32
    %230 = vector.broadcast %cst_80 : f32 to vector<32x1xf32>
    %231 = arith.mulf %229, %230 : vector<32x1xf32>
    %232 = vector.broadcast %231 : vector<32x1xf32> to vector<32x32xf32>
    %233 = arith.subf %225, %232 : vector<32x32xf32>
    %234 = arith.mulf %233, %233 : vector<32x32xf32>
    %cst_81 = arith.constant dense<0.000000e+00> : vector<32xf32>
    %235 = vector.multi_reduction <add>, %234, %cst_81 [1] : vector<32x32xf32> to vector<32xf32>
    %236 = vector.shape_cast %235 : vector<32xf32> to vector<32x1xf32>
    %cst_82 = arith.constant 3.125000e-02 : f32
    %237 = vector.broadcast %cst_82 : f32 to vector<32x1xf32>
    %238 = arith.mulf %236, %237 : vector<32x1xf32>
    %cst_83 = arith.constant 9.99999974E-6 : f32
    %239 = vector.broadcast %cst_83 : f32 to vector<32x1xf32>
    %240 = arith.addf %238, %239 : vector<32x1xf32>
    %241 = math.rsqrt %240 : vector<32x1xf32>
    %242 = arith.mulf %226, %241 : vector<32x1xf32>
    %243 = arith.mulf %231, %242 : vector<32x1xf32>
    %244 = arith.subf %227, %243 : vector<32x1xf32>
    %245 = vector.broadcast %242 : vector<32x1xf32> to vector<32x32xf32>
    %246 = arith.mulf %225, %245 : vector<32x32xf32>
    %247 = vector.broadcast %244 : vector<32x1xf32> to vector<32x32xf32>
    %248 = arith.addf %246, %247 : vector<32x32xf32>
    %249 = arith.addf %120, %248 : vector<32x32xf32>
    %cst_84 = arith.constant 0.000000e+00 : f32
    %250 = vector.broadcast %cst_84 : f32 to vector<32x2xf32>
    %251 = vector.extract_strided_slice %249 {offsets = [0, 0], sizes = [32, 30], strides = [1, 1]} : vector<32x32xf32> to vector<32x30xf32>
    %252 = tpu.concatenate %250, %251 in 1 : vector<32x2xf32>, vector<32x30xf32> -> vector<32x32xf32>
    %c2_i32_85 = arith.constant 2 : i32
    %253 = vector.broadcast %c2_i32_85 : i32 to vector<1x32xi32>
    %254 = arith.cmpi sge, %0, %253 : vector<1x32xi32>
    %cst_86 = arith.constant 0.000000e+00 : f32
    %255 = vector.shape_cast %254 : vector<1x32xi1> to vector<1x32xi1>
    %256 = vector.broadcast %255 : vector<1x32xi1> to vector<32x32xi1>
    %257 = vector.broadcast %cst_86 : f32 to vector<32x32xf32>
    %258 = arith.select %256, %252, %257 : vector<32x32xi1>, vector<32x32xf32>
    %cst_87 = arith.constant 0.000000e+00 : f32
    %259 = vector.broadcast %cst_87 : f32 to vector<32x1xf32>
    %260 = vector.extract_strided_slice %249 {offsets = [0, 0], sizes = [32, 31], strides = [1, 1]} : vector<32x32xf32> to vector<32x31xf32>
    %261 = tpu.concatenate %259, %260 in 1 : vector<32x1xf32>, vector<32x31xf32> -> vector<32x32xf32>
    %c1_i32_88 = arith.constant 1 : i32
    %262 = vector.broadcast %c1_i32_88 : i32 to vector<1x32xi32>
    %263 = arith.cmpi sge, %0, %262 : vector<1x32xi32>
    %cst_89 = arith.constant 0.000000e+00 : f32
    %264 = vector.shape_cast %263 : vector<1x32xi1> to vector<1x32xi1>
    %265 = vector.broadcast %264 : vector<1x32xi1> to vector<32x32xi1>
    %266 = vector.broadcast %cst_89 : f32 to vector<32x32xf32>
    %267 = arith.select %265, %261, %266 : vector<32x32xi1>, vector<32x32xf32>
    %cst_90 = arith.constant 0.000000e+00 : f32
    %268 = vector.broadcast %cst_90 : f32 to vector<32x1xf32>
    %269 = vector.extract_strided_slice %249 {offsets = [0, 1], sizes = [32, 31], strides = [1, 1]} : vector<32x32xf32> to vector<32x31xf32>
    %270 = tpu.concatenate %269, %268 in 1 : vector<32x31xf32>, vector<32x1xf32> -> vector<32x32xf32>
    %c15_i32_91 = arith.constant 15 : i32
    %271 = vector.broadcast %c15_i32_91 : i32 to vector<1x32xi32>
    %272 = arith.cmpi slt, %0, %271 : vector<1x32xi32>
    %cst_92 = arith.constant 0.000000e+00 : f32
    %273 = vector.shape_cast %272 : vector<1x32xi1> to vector<1x32xi1>
    %274 = vector.broadcast %273 : vector<1x32xi1> to vector<32x32xi1>
    %275 = vector.broadcast %cst_92 : f32 to vector<32x32xf32>
    %276 = arith.select %274, %270, %275 : vector<32x32xi1>, vector<32x32xf32>
    %cst_93 = arith.constant 0.000000e+00 : f32
    %277 = vector.broadcast %cst_93 : f32 to vector<32x2xf32>
    %278 = vector.extract_strided_slice %249 {offsets = [0, 2], sizes = [32, 30], strides = [1, 1]} : vector<32x32xf32> to vector<32x30xf32>
    %279 = tpu.concatenate %278, %277 in 1 : vector<32x30xf32>, vector<32x2xf32> -> vector<32x32xf32>
    %c14_i32_94 = arith.constant 14 : i32
    %280 = vector.broadcast %c14_i32_94 : i32 to vector<1x32xi32>
    %281 = arith.cmpi slt, %0, %280 : vector<1x32xi32>
    %cst_95 = arith.constant 0.000000e+00 : f32
    %282 = vector.shape_cast %281 : vector<1x32xi1> to vector<1x32xi1>
    %283 = vector.broadcast %282 : vector<1x32xi1> to vector<32x32xi1>
    %284 = vector.broadcast %cst_95 : f32 to vector<32x32xf32>
    %285 = arith.select %283, %279, %284 : vector<32x32xi1>, vector<32x32xf32>
    %286 = tpu.concatenate %258, %267, %249, %276, %285 in 0 : vector<32x32xf32>, vector<32x32xf32>, vector<32x32xf32>, vector<32x32xf32>, vector<32x32xf32> -> vector<160x32xf32>
    %287 = arith.truncf %286 : vector<160x32xf32> to vector<160x32xbf16>
    %c0_96 = arith.constant 0 : index
    %c0_97 = arith.constant 0 : index
    %288 = vector.load %arg11[%c0_96, %c0_97] : memref<32x160xbf16, #tpu.memory_space<vmem>>, vector<32x160xbf16>
    %cst_98 = arith.constant dense<0.000000e+00> : vector<32x32xf32>
    %289 = tpu.matmul %288, %287, %cst_98 {dimension_numbers = #tpu.dot_dimension_numbers<[1], [0], [0], [1], [0, 0, 1, 1], [], []>} : vector<32x160xbf16>, vector<160x32xbf16>, vector<32x32xf32> -> vector<32x32xf32>
    %c0_99 = arith.constant 0 : index
    %c0_100 = arith.constant 0 : index
    %290 = vector.load %arg12[%c0_99, %c0_100] : memref<32x1xf32, #tpu.memory_space<vmem>>, vector<32x1xf32>
    %c0_101 = arith.constant 0 : index
    %c0_102 = arith.constant 0 : index
    %291 = vector.load %arg13[%c0_101, %c0_102] : memref<32x1xf32, #tpu.memory_space<vmem>>, vector<32x1xf32>
    %cst_103 = arith.constant dense<0.000000e+00> : vector<32xf32>
    %292 = vector.multi_reduction <add>, %289, %cst_103 [1] : vector<32x32xf32> to vector<32xf32>
    %293 = vector.shape_cast %292 : vector<32xf32> to vector<32x1xf32>
    %cst_104 = arith.constant 3.125000e-02 : f32
    %294 = vector.broadcast %cst_104 : f32 to vector<32x1xf32>
    %295 = arith.mulf %293, %294 : vector<32x1xf32>
    %296 = vector.broadcast %295 : vector<32x1xf32> to vector<32x32xf32>
    %297 = arith.subf %289, %296 : vector<32x32xf32>
    %298 = arith.mulf %297, %297 : vector<32x32xf32>
    %cst_105 = arith.constant dense<0.000000e+00> : vector<32xf32>
    %299 = vector.multi_reduction <add>, %298, %cst_105 [1] : vector<32x32xf32> to vector<32xf32>
    %300 = vector.shape_cast %299 : vector<32xf32> to vector<32x1xf32>
    %cst_106 = arith.constant 3.125000e-02 : f32
    %301 = vector.broadcast %cst_106 : f32 to vector<32x1xf32>
    %302 = arith.mulf %300, %301 : vector<32x1xf32>
    %cst_107 = arith.constant 9.99999974E-6 : f32
    %303 = vector.broadcast %cst_107 : f32 to vector<32x1xf32>
    %304 = arith.addf %302, %303 : vector<32x1xf32>
    %305 = math.rsqrt %304 : vector<32x1xf32>
    %306 = arith.mulf %290, %305 : vector<32x1xf32>
    %307 = arith.mulf %295, %306 : vector<32x1xf32>
    %308 = arith.subf %291, %307 : vector<32x1xf32>
    %309 = vector.broadcast %306 : vector<32x1xf32> to vector<32x32xf32>
    %310 = arith.mulf %289, %309 : vector<32x32xf32>
    %311 = vector.broadcast %308 : vector<32x1xf32> to vector<32x32xf32>
    %312 = arith.addf %310, %311 : vector<32x32xf32>
    %cst_108 = arith.constant 0.000000e+00 : f32
    %313 = vector.broadcast %cst_108 : f32 to vector<32x32xf32>
    %314 = arith.maximumf %312, %313 : vector<32x32xf32>
    %cst_109 = arith.constant 0.000000e+00 : f32
    %315 = vector.broadcast %cst_109 : f32 to vector<32x2xf32>
    %316 = vector.extract_strided_slice %314 {offsets = [0, 0], sizes = [32, 30], strides = [1, 1]} : vector<32x32xf32> to vector<32x30xf32>
    %317 = tpu.concatenate %315, %316 in 1 : vector<32x2xf32>, vector<32x30xf32> -> vector<32x32xf32>
    %c2_i32_110 = arith.constant 2 : i32
    %318 = vector.broadcast %c2_i32_110 : i32 to vector<1x32xi32>
    %319 = arith.cmpi sge, %0, %318 : vector<1x32xi32>
    %cst_111 = arith.constant 0.000000e+00 : f32
    %320 = vector.shape_cast %319 : vector<1x32xi1> to vector<1x32xi1>
    %321 = vector.broadcast %320 : vector<1x32xi1> to vector<32x32xi1>
    %322 = vector.broadcast %cst_111 : f32 to vector<32x32xf32>
    %323 = arith.select %321, %317, %322 : vector<32x32xi1>, vector<32x32xf32>
    %cst_112 = arith.constant 0.000000e+00 : f32
    %324 = vector.broadcast %cst_112 : f32 to vector<32x1xf32>
    %325 = vector.extract_strided_slice %314 {offsets = [0, 0], sizes = [32, 31], strides = [1, 1]} : vector<32x32xf32> to vector<32x31xf32>
    %326 = tpu.concatenate %324, %325 in 1 : vector<32x1xf32>, vector<32x31xf32> -> vector<32x32xf32>
    %c1_i32_113 = arith.constant 1 : i32
    %327 = vector.broadcast %c1_i32_113 : i32 to vector<1x32xi32>
    %328 = arith.cmpi sge, %0, %327 : vector<1x32xi32>
    %cst_114 = arith.constant 0.000000e+00 : f32
    %329 = vector.shape_cast %328 : vector<1x32xi1> to vector<1x32xi1>
    %330 = vector.broadcast %329 : vector<1x32xi1> to vector<32x32xi1>
    %331 = vector.broadcast %cst_114 : f32 to vector<32x32xf32>
    %332 = arith.select %330, %326, %331 : vector<32x32xi1>, vector<32x32xf32>
    %cst_115 = arith.constant 0.000000e+00 : f32
    %333 = vector.broadcast %cst_115 : f32 to vector<32x1xf32>
    %334 = vector.extract_strided_slice %314 {offsets = [0, 1], sizes = [32, 31], strides = [1, 1]} : vector<32x32xf32> to vector<32x31xf32>
    %335 = tpu.concatenate %334, %333 in 1 : vector<32x31xf32>, vector<32x1xf32> -> vector<32x32xf32>
    %c15_i32_116 = arith.constant 15 : i32
    %336 = vector.broadcast %c15_i32_116 : i32 to vector<1x32xi32>
    %337 = arith.cmpi slt, %0, %336 : vector<1x32xi32>
    %cst_117 = arith.constant 0.000000e+00 : f32
    %338 = vector.shape_cast %337 : vector<1x32xi1> to vector<1x32xi1>
    %339 = vector.broadcast %338 : vector<1x32xi1> to vector<32x32xi1>
    %340 = vector.broadcast %cst_117 : f32 to vector<32x32xf32>
    %341 = arith.select %339, %335, %340 : vector<32x32xi1>, vector<32x32xf32>
    %cst_118 = arith.constant 0.000000e+00 : f32
    %342 = vector.broadcast %cst_118 : f32 to vector<32x2xf32>
    %343 = vector.extract_strided_slice %314 {offsets = [0, 2], sizes = [32, 30], strides = [1, 1]} : vector<32x32xf32> to vector<32x30xf32>
    %344 = tpu.concatenate %343, %342 in 1 : vector<32x30xf32>, vector<32x2xf32> -> vector<32x32xf32>
    %c14_i32_119 = arith.constant 14 : i32
    %345 = vector.broadcast %c14_i32_119 : i32 to vector<1x32xi32>
    %346 = arith.cmpi slt, %0, %345 : vector<1x32xi32>
    %cst_120 = arith.constant 0.000000e+00 : f32
    %347 = vector.shape_cast %346 : vector<1x32xi1> to vector<1x32xi1>
    %348 = vector.broadcast %347 : vector<1x32xi1> to vector<32x32xi1>
    %349 = vector.broadcast %cst_120 : f32 to vector<32x32xf32>
    %350 = arith.select %348, %344, %349 : vector<32x32xi1>, vector<32x32xf32>
    %351 = tpu.concatenate %323, %332, %314, %341, %350 in 0 : vector<32x32xf32>, vector<32x32xf32>, vector<32x32xf32>, vector<32x32xf32>, vector<32x32xf32> -> vector<160x32xf32>
    %352 = arith.truncf %351 : vector<160x32xf32> to vector<160x32xbf16>
    %c0_121 = arith.constant 0 : index
    %c0_122 = arith.constant 0 : index
    %353 = vector.load %arg14[%c0_121, %c0_122] : memref<32x160xbf16, #tpu.memory_space<vmem>>, vector<32x160xbf16>
    %cst_123 = arith.constant dense<0.000000e+00> : vector<32x32xf32>
    %354 = tpu.matmul %353, %352, %cst_123 {dimension_numbers = #tpu.dot_dimension_numbers<[1], [0], [0], [1], [0, 0, 1, 1], [], []>} : vector<32x160xbf16>, vector<160x32xbf16>, vector<32x32xf32> -> vector<32x32xf32>
    %c0_124 = arith.constant 0 : index
    %c0_125 = arith.constant 0 : index
    %355 = vector.load %arg15[%c0_124, %c0_125] : memref<32x1xf32, #tpu.memory_space<vmem>>, vector<32x1xf32>
    %c0_126 = arith.constant 0 : index
    %c0_127 = arith.constant 0 : index
    %356 = vector.load %arg16[%c0_126, %c0_127] : memref<32x1xf32, #tpu.memory_space<vmem>>, vector<32x1xf32>
    %cst_128 = arith.constant dense<0.000000e+00> : vector<32xf32>
    %357 = vector.multi_reduction <add>, %354, %cst_128 [1] : vector<32x32xf32> to vector<32xf32>
    %358 = vector.shape_cast %357 : vector<32xf32> to vector<32x1xf32>
    %cst_129 = arith.constant 3.125000e-02 : f32
    %359 = vector.broadcast %cst_129 : f32 to vector<32x1xf32>
    %360 = arith.mulf %358, %359 : vector<32x1xf32>
    %361 = vector.broadcast %360 : vector<32x1xf32> to vector<32x32xf32>
    %362 = arith.subf %354, %361 : vector<32x32xf32>
    %363 = arith.mulf %362, %362 : vector<32x32xf32>
    %cst_130 = arith.constant dense<0.000000e+00> : vector<32xf32>
    %364 = vector.multi_reduction <add>, %363, %cst_130 [1] : vector<32x32xf32> to vector<32xf32>
    %365 = vector.shape_cast %364 : vector<32xf32> to vector<32x1xf32>
    %cst_131 = arith.constant 3.125000e-02 : f32
    %366 = vector.broadcast %cst_131 : f32 to vector<32x1xf32>
    %367 = arith.mulf %365, %366 : vector<32x1xf32>
    %cst_132 = arith.constant 9.99999974E-6 : f32
    %368 = vector.broadcast %cst_132 : f32 to vector<32x1xf32>
    %369 = arith.addf %367, %368 : vector<32x1xf32>
    %370 = math.rsqrt %369 : vector<32x1xf32>
    %371 = arith.mulf %355, %370 : vector<32x1xf32>
    %372 = arith.mulf %360, %371 : vector<32x1xf32>
    %373 = arith.subf %356, %372 : vector<32x1xf32>
    %374 = vector.broadcast %371 : vector<32x1xf32> to vector<32x32xf32>
    %375 = arith.mulf %354, %374 : vector<32x32xf32>
    %376 = vector.broadcast %373 : vector<32x1xf32> to vector<32x32xf32>
    %377 = arith.addf %375, %376 : vector<32x32xf32>
    %378 = arith.addf %249, %377 : vector<32x32xf32>
    %cst_133 = arith.constant 0.000000e+00 : f32
    %379 = vector.broadcast %cst_133 : f32 to vector<32x1xf32>
    %380 = vector.extract_strided_slice %378 {offsets = [0, 0], sizes = [32, 31], strides = [1, 1]} : vector<32x32xf32> to vector<32x31xf32>
    %381 = tpu.concatenate %379, %380 in 1 : vector<32x1xf32>, vector<32x31xf32> -> vector<32x32xf32>
    %c1_i32_134 = arith.constant 1 : i32
    %382 = vector.broadcast %c1_i32_134 : i32 to vector<1x32xi32>
    %383 = arith.cmpi sge, %0, %382 : vector<1x32xi32>
    %cst_135 = arith.constant 0.000000e+00 : f32
    %384 = vector.shape_cast %383 : vector<1x32xi1> to vector<1x32xi1>
    %385 = vector.broadcast %384 : vector<1x32xi1> to vector<32x32xi1>
    %386 = vector.broadcast %cst_135 : f32 to vector<32x32xf32>
    %387 = arith.select %385, %381, %386 : vector<32x32xi1>, vector<32x32xf32>
    %cst_136 = arith.constant 0.000000e+00 : f32
    %388 = vector.broadcast %cst_136 : f32 to vector<32x1xf32>
    %389 = vector.extract_strided_slice %378 {offsets = [0, 1], sizes = [32, 31], strides = [1, 1]} : vector<32x32xf32> to vector<32x31xf32>
    %390 = tpu.concatenate %389, %388 in 1 : vector<32x31xf32>, vector<32x1xf32> -> vector<32x32xf32>
    %c15_i32_137 = arith.constant 15 : i32
    %391 = vector.broadcast %c15_i32_137 : i32 to vector<1x32xi32>
    %392 = arith.cmpi slt, %0, %391 : vector<1x32xi32>
    %cst_138 = arith.constant 0.000000e+00 : f32
    %393 = vector.shape_cast %392 : vector<1x32xi1> to vector<1x32xi1>
    %394 = vector.broadcast %393 : vector<1x32xi1> to vector<32x32xi1>
    %395 = vector.broadcast %cst_138 : f32 to vector<32x32xf32>
    %396 = arith.select %394, %390, %395 : vector<32x32xi1>, vector<32x32xf32>
    %397 = tpu.concatenate %387, %378, %396 in 0 : vector<32x32xf32>, vector<32x32xf32>, vector<32x32xf32> -> vector<96x32xf32>
    %398 = arith.truncf %397 : vector<96x32xf32> to vector<96x32xbf16>
    %c0_139 = arith.constant 0 : index
    %c0_140 = arith.constant 0 : index
    %399 = vector.load %arg17[%c0_139, %c0_140] : memref<4x96xbf16, #tpu.memory_space<vmem>>, vector<4x96xbf16>
    %cst_141 = arith.constant dense<0.000000e+00> : vector<4x32xf32>
    %400 = tpu.matmul %399, %398, %cst_141 {dimension_numbers = #tpu.dot_dimension_numbers<[1], [0], [0], [1], [0, 0, 1, 1], [], []>} : vector<4x96xbf16>, vector<96x32xbf16>, vector<4x32xf32> -> vector<4x32xf32>
    %c0_142 = arith.constant 0 : index
    %c0_143 = arith.constant 0 : index
    %401 = vector.load %arg18[%c0_142, %c0_143] : memref<4x1xf32, #tpu.memory_space<vmem>>, vector<4x1xf32>
    %402 = vector.broadcast %401 : vector<4x1xf32> to vector<4x32xf32>
    %403 = arith.addf %400, %402 : vector<4x32xf32>
    %c0_144 = arith.constant 0 : index
    %c0_145 = arith.constant 0 : index
    %404 = vector.load %arg19[%c0_144, %c0_145] : memref<4x32xf32, #tpu.memory_space<vmem>>, vector<4x32xf32>
    tpu.vector_store %arg19[%c0_144, %c0_145], %403 {strides = array<i32>} : memref<4x32xf32, #tpu.memory_space<vmem>>, vector<4x32xf32>,
    return
  }
}

</mosaic_0001>

<llo_original>
// kernel: resnet1d_forward.1
$region0: #{resnet1d_forward.1}
  #allocation0 [shape = 'u32[]', space=smem, size = 0x4, offset = 0x4, fixed_abs, tag = 'smem constant byte address 0x4 - core index']
  #allocation1 [shape = 'u32[144,128]{1,0:T(1,128)}', space=vmem, size = 0x12000, scoped, tag = 'internal scratch']
  %s0 = inlined_call_operand.vmem [shape: f32[4,32], index: 0, kind: input, shape index: {}]
  %s1 = inlined_call_operand.vmem [shape: s32[1,32], index: 1, kind: input, shape index: {}]
  %s2 = inlined_call_operand.vmem [shape: bf16[32,44], index: 2, kind: input, shape index: {}]
  %s3 = inlined_call_operand.vmem [shape: f32[32,1], index: 3, kind: input, shape index: {}]
  %s4 = inlined_call_operand.vmem [shape: f32[32,1], index: 4, kind: input, shape index: {}]
  %s5 = inlined_call_operand.vmem [shape: bf16[32,160], index: 5, kind: input, shape index: {}]
  %s6 = inlined_call_operand.vmem [shape: f32[32,1], index: 6, kind: input, shape index: {}]
  %s7 = inlined_call_operand.vmem [shape: f32[32,1], index: 7, kind: input, shape index: {}]
  %s8 = inlined_call_operand.vmem [shape: bf16[32,160], index: 8, kind: input, shape index: {}]
  %s9 = inlined_call_operand.vmem [shape: f32[32,1], index: 9, kind: input, shape index: {}]
  %s10 = inlined_call_operand.vmem [shape: f32[32,1], index: 10, kind: input, shape index: {}]
  %s11 = inlined_call_operand.vmem [shape: bf16[32,160], index: 11, kind: input, shape index: {}]
  %s12 = inlined_call_operand.vmem [shape: f32[32,1], index: 12, kind: input, shape index: {}]
  %s13 = inlined_call_operand.vmem [shape: f32[32,1], index: 13, kind: input, shape index: {}]
  %s14 = inlined_call_operand.vmem [shape: bf16[32,160], index: 14, kind: input, shape index: {}]
  %s15 = inlined_call_operand.vmem [shape: f32[32,1], index: 15, kind: input, shape index: {}]
  %s16 = inlined_call_operand.vmem [shape: f32[32,1], index: 16, kind: input, shape index: {}]
  %s17 = inlined_call_operand.vmem [shape: bf16[4,96], index: 17, kind: input, shape index: {}]
  %s18 = inlined_call_operand.vmem [shape: f32[4,1], index: 18, kind: input, shape index: {}]
  %s19 = inlined_call_operand.vmem [shape: f32[4,32], index: 19, kind: output, shape index: {}]
  %s20 = sld [smem:[#allocation0]]
  $region86: #{resnet1d_forward.1} parent=0
    _
  %s22 = ssub.s32 1, %s20
  %s23 = scalar_select 0, %s22, %s20
  // Predicated region
  $region2: #{resnet1d_forward.1} parent=0 // pred_check
    _
  $region3: #{resnet1d_forward.1} parent=0 // pred_check_branch
    %25 = sbr.rel (0) target = $region5
  $region4: #{resnet1d_forward.1} parent=0 // pred_region
    _
  $region5: #{resnet1d_forward.1} parent=0 // pred_fallthru
    _
  // Predicated region
  $region6: #{resnet1d_forward.1} parent=0 // pred_check
    _
  $region7: #{resnet1d_forward.1} parent=0 // pred_check_branch
    %27 = sbr.rel (0) target = $region9
  $region8: #{resnet1d_forward.1} parent=0 // pred_region
    _
  $region9: #{resnet1d_forward.1} parent=0 // pred_fallthru
    _
  // Predicated region
  $region10: #{resnet1d_forward.1} parent=0 // pred_check
    _
  $region11: #{resnet1d_forward.1} parent=0 // pred_check_branch
    %29 = sbr.rel (0) target = $region13
  $region12: #{resnet1d_forward.1} parent=0 // pred_region
    _
  $region13: #{resnet1d_forward.1} parent=0 // pred_fallthru
    _
  // Predicated region
  $region14: #{resnet1d_forward.1} parent=0 // pred_check
    _
  $region15: #{resnet1d_forward.1} parent=0 // pred_check_branch
    %31 = sbr.rel (0) target = $region17
  $region16: #{resnet1d_forward.1} parent=0 // pred_region
    _
  $region17: #{resnet1d_forward.1} parent=0 // pred_fallthru
    _
  // Predicated region
  $region18: #{resnet1d_forward.1} parent=0 // pred_check
    _
  $region19: #{resnet1d_forward.1} parent=0 // pred_check_branch
    %33 = sbr.rel (0) target = $region21
  $region20: #{resnet1d_forward.1} parent=0 // pred_region
    _
  $region21: #{resnet1d_forward.1} parent=0 // pred_fallthru
    _
  // Predicated region
  $region22: #{resnet1d_forward.1} parent=0 // pred_check
    _
  $region23: #{resnet1d_forward.1} parent=0 // pred_check_branch
    %35 = sbr.rel (0) target = $region25
  $region24: #{resnet1d_forward.1} parent=0 // pred_region
    _
  $region25: #{resnet1d_forward.1} parent=0 // pred_fallthru
    _
  // Predicated region
  $region26: #{resnet1d_forward.1} parent=0 // pred_check
    _
  $region27: #{resnet1d_forward.1} parent=0 // pred_check_branch
    %37 = sbr.rel (0) target = $region29
  $region28: #{resnet1d_forward.1} parent=0 // pred_region
    _
  $region29: #{resnet1d_forward.1} parent=0 // pred_fallthru
    _
  // Predicated region
  $region30: #{resnet1d_forward.1} parent=0 // pred_check
    _
  $region31: #{resnet1d_forward.1} parent=0 // pred_check_branch
    %39 = sbr.rel (0) target = $region33
  $region32: #{resnet1d_forward.1} parent=0 // pred_region
    _
  $region33: #{resnet1d_forward.1} parent=0 // pred_fallthru
    _
  // Predicated region
  $region34: #{resnet1d_forward.1} parent=0 // pred_check
    _
  $region35: #{resnet1d_forward.1} parent=0 // pred_check_branch
    %41 = sbr.rel (0) target = $region37
  $region36: #{resnet1d_forward.1} parent=0 // pred_region
    _
  $region37: #{resnet1d_forward.1} parent=0 // pred_fallthru
    _
  // Predicated region
  $region38: #{resnet1d_forward.1} parent=0 // pred_check
    _
  $region39: #{resnet1d_forward.1} parent=0 // pred_check_branch
    %43 = sbr.rel (0) target = $region41
  $region40: #{resnet1d_forward.1} parent=0 // pred_region
    _
  $region41: #{resnet1d_forward.1} parent=0 // pred_fallthru
    _
  // Predicated region
  $region42: #{resnet1d_forward.1} parent=0 // pred_check
    _
  $region43: #{resnet1d_forward.1} parent=0 // pred_check_branch
    %45 = sbr.rel (0) target = $region45
  $region44: #{resnet1d_forward.1} parent=0 // pred_region
    _
  $region45: #{resnet1d_forward.1} parent=0 // pred_fallthru
    _
  // Predicated region
  $region46: #{resnet1d_forward.1} parent=0 // pred_check
    _
  $region47: #{resnet1d_forward.1} parent=0 // pred_check_branch
    %47 = sbr.rel (0) target = $region49
  $region48: #{resnet1d_forward.1} parent=0 // pred_region
    _
  $region49: #{resnet1d_forward.1} parent=0 // pred_fallthru
    _
  // Predicated region
  $region50: #{resnet1d_forward.1} parent=0 // pred_check
    _
  $region51: #{resnet1d_forward.1} parent=0 // pred_check_branch
    %49 = sbr.rel (0) target = $region53
  $region52: #{resnet1d_forward.1} parent=0 // pred_region
    _
  $region53: #{resnet1d_forward.1} parent=0 // pred_fallthru
    _
  // Predicated region
  $region54: #{resnet1d_forward.1} parent=0 // pred_check
    _
  $region55: #{resnet1d_forward.1} parent=0 // pred_check_branch
    %51 = sbr.rel (0) target = $region57
  $region56: #{resnet1d_forward.1} parent=0 // pred_region
    _
  $region57: #{resnet1d_forward.1} parent=0 // pred_fallthru
    _
  // Predicated region
  $region58: #{resnet1d_forward.1} parent=0 // pred_check
    _
  $region59: #{resnet1d_forward.1} parent=0 // pred_check_branch
    %53 = sbr.rel (0) target = $region61
  $region60: #{resnet1d_forward.1} parent=0 // pred_region
    _
  $region61: #{resnet1d_forward.1} parent=0 // pred_fallthru
    _
  // Predicated region
  $region62: #{resnet1d_forward.1} parent=0 // pred_check
    _
  $region63: #{resnet1d_forward.1} parent=0 // pred_check_branch
    %55 = sbr.rel (0) target = $region65
  $region64: #{resnet1d_forward.1} parent=0 // pred_region
    _
  $region65: #{resnet1d_forward.1} parent=0 // pred_fallthru
    _
  // Predicated region
  $region66: #{resnet1d_forward.1} parent=0 // pred_check
    _
  $region67: #{resnet1d_forward.1} parent=0 // pred_check_branch
    %57 = sbr.rel (0) target = $region69
  $region68: #{resnet1d_forward.1} parent=0 // pred_region
    _
  $region69: #{resnet1d_forward.1} parent=0 // pred_fallthru
    _
  // Predicated region
  $region70: #{resnet1d_forward.1} parent=0 // pred_check
    _
  $region71: #{resnet1d_forward.1} parent=0 // pred_check_branch
    %59 = sbr.rel (0) target = $region73
  $region72: #{resnet1d_forward.1} parent=0 // pred_region
    _
  $region73: #{resnet1d_forward.1} parent=0 // pred_fallthru
    _
  // Predicated region
  $region74: #{resnet1d_forward.1} parent=0 // pred_check
    _
  $region75: #{resnet1d_forward.1} parent=0 // pred_check_branch
    %61 = sbr.rel (0) target = $region77
  $region76: #{resnet1d_forward.1} parent=0 // pred_region
    _
  $region77: #{resnet1d_forward.1} parent=0 // pred_fallthru
    _
  %v63 = vld [vmem:[%s1] sm:$0x1]
  %v64 = vld [vmem:[%s0] sm:$0xf]
  %66 = vrot.lane.b32.xlu0 %v64, 5
  %v67 = vpop.permute.xlu0 %66
  %vm69 = vcmask 39936
  %v70 = vsel %vm69, 0.0, %v67
  %vm71 = vcmp.ge.s32.totalorder %v63, 5
  %v72 = vsel %vm71, 1, 0
  %v73 = vlaneseq
  %v74 = vshrl.u32 %v73, 7
  %v75 = vsub.s32 0, %v74
  %v76 = vrot.slane %v72, %v75
  %vm77 = vcmp.eq.s32.totalorder %v76, 1
  %v78 = vsel %vm77, %v70, 0.0
  %79 = vrot.lane.b32.xlu0 %v64, 4
  %v80 = vpop.permute.xlu0 %79
  %vm82 = vcmask 31744
  %v83 = vsel %vm82, 0.0, %v80
  %vm84 = vcmp.ge.s32.totalorder %v63, 4
  %v85 = vsel %vm84, 1, 0
  %v86 = vlaneseq
  %v87 = vshrl.u32 %v86, 7
  %v88 = vsub.s32 0, %v87
  %v89 = vrot.slane %v85, %v88
  %vm90 = vcmp.eq.s32.totalorder %v89, 1
  %v91 = vsel %vm90, %v83, 0.0
  %92 = vrot.lane.b32.xlu0 %v64, 3
  %v93 = vpop.permute.xlu0 %92
  %vm95 = vcmask 23552
  %v96 = vsel %vm95, 0.0, %v93
  %vm97 = vcmp.ge.s32.totalorder %v63, 3
  %v98 = vsel %vm97, 1, 0
  %v99 = vlaneseq
  %v100 = vshrl.u32 %v99, 7
  %v101 = vsub.s32 0, %v100
  %v102 = vrot.slane %v98, %v101
  %vm103 = vcmp.eq.s32.totalorder %v102, 1
  %v104 = vsel %vm103, %v96, 0.0
  %105 = vrot.lane.b32.xlu0 %v64, 2
  %v106 = vpop.permute.xlu0 %105
  %vm108 = vcmask 15360
  %v109 = vsel %vm108, 0.0, %v106
  %vm110 = vcmp.ge.s32.totalorder %v63, 2
  %v111 = vsel %vm110, 1, 0
  %v112 = vlaneseq
  %v113 = vshrl.u32 %v112, 7
  %v114 = vsub.s32 0, %v113
  %v115 = vrot.slane %v111, %v114
  %vm116 = vcmp.eq.s32.totalorder %v115, 1
  %v117 = vsel %vm116, %v109, 0.0
  %118 = vrot.lane.b32.xlu0 %v64, 1
  %v119 = vpop.permute.xlu0 %118
  %vm121 = vcmask 7168
  %v122 = vsel %vm121, 0.0, %v119
  %vm123 = vcmp.ge.s32.totalorder %v63, 1
  %v124 = vsel %vm123, 1, 0
  %v125 = vlaneseq
  %v126 = vshrl.u32 %v125, 7
  %v127 = vsub.s32 0, %v126
  %v128 = vrot.slane %v124, %v127
  %vm129 = vcmp.eq.s32.totalorder %v128, 1
  %v130 = vsel %vm129, %v122, 0.0
  %131 = vrot.lane.b32.xlu0 %v64, 127
  %v132 = vpop.permute.xlu0 %131
  %vm134 = vcmask 252928
  %v135 = vsel %vm134, %v132, 0.0
  %vm136 = vcmp.lt.s32.totalorder %v63, 15
  %v137 = vsel %vm136, 1, 0
  %v138 = vlaneseq
  %v139 = vshrl.u32 %v138, 7
  %v140 = vsub.s32 0, %v139
  %v141 = vrot.slane %v137, %v140
  %vm142 = vcmp.eq.s32.totalorder %v141, 1
  %v143 = vsel %vm142, %v135, 0.0
  %144 = vrot.lane.b32.xlu0 %v64, 126
  %v145 = vpop.permute.xlu0 %144
  %vm147 = vcmask 244736
  %v148 = vsel %vm147, %v145, 0.0
  %vm149 = vcmp.lt.s32.totalorder %v63, 14
  %v150 = vsel %vm149, 1, 0
  %v151 = vlaneseq
  %v152 = vshrl.u32 %v151, 7
  %v153 = vsub.s32 0, %v152
  %v154 = vrot.slane %v150, %v153
  %vm155 = vcmp.eq.s32.totalorder %v154, 1
  %v156 = vsel %vm155, %v148, 0.0
  %157 = vrot.lane.b32.xlu0 %v64, 125
  %v158 = vpop.permute.xlu0 %157
  %vm160 = vcmask 236544
  %v161 = vsel %vm160, %v158, 0.0
  %vm162 = vcmp.lt.s32.totalorder %v63, 13
  %v163 = vsel %vm162, 1, 0
  %v164 = vlaneseq
  %v165 = vshrl.u32 %v164, 7
  %v166 = vsub.s32 0, %v165
  %v167 = vrot.slane %v163, %v166
  %vm168 = vcmp.eq.s32.totalorder %v167, 1
  %v169 = vsel %vm168, %v161, 0.0
  %170 = vrot.lane.b32.xlu0 %v64, 124
  %v171 = vpop.permute.xlu0 %170
  %vm173 = vcmask 228352
  %v174 = vsel %vm173, %v171, 0.0
  %vm175 = vcmp.lt.s32.totalorder %v63, 12
  %v176 = vsel %vm175, 1, 0
  %v177 = vlaneseq
  %v178 = vshrl.u32 %v177, 7
  %v179 = vsub.s32 0, %v178
  %v180 = vrot.slane %v176, %v179
  %vm181 = vcmp.eq.s32.totalorder %v180, 1
  %v182 = vsel %vm181, %v174, 0.0
  %183 = vrot.lane.b32.xlu0 %v64, 123
  %v184 = vpop.permute.xlu0 %183
  %vm186 = vcmask 220160
  %v187 = vsel %vm186, %v184, 0.0
  %vm188 = vcmp.lt.s32.totalorder %v63, 11
  %v189 = vsel %vm188, 1, 0
  %v190 = vlaneseq
  %v191 = vshrl.u32 %v190, 7
  %v192 = vsub.s32 0, %v191
  %v193 = vrot.slane %v189, %v192
  %vm194 = vcmp.eq.s32.totalorder %v193, 1
  %v195 = vsel %vm194, %v187, 0.0
  %v197 = vrot.slane %v91, 4
  %v200 = vrot.slane %v117, 4
  %v202 = vrot.slane %v64, 4
  %v205 = vrot.slane %v156, 4
  %v208 = vrot.slane %v182, 4
  %vm210 = vcmask 1043456
  %v211 = vsel %vm210, %v78, %v197
  %v212 = vsel %vm210, %v104, %v200
  %v213 = vsel %vm210, %v130, %v202
  %v214 = vsel %vm210, %v143, %v205
  %v215 = vsel %vm210, %v169, %v208
  %v216 = vpack.c.bf16 %v212, %v211
  %v217 = vpack.c.bf16 %v214, %v213
  %v218 = vpack.c.bf16 %v195, %v215
  %v219 = vld [vmem:[%s2] sm:$0xf]
  %v220 = vld [vmem:[%s2 + $0x4] sm:$0xf]
  %v221 = vld [vmem:[%s2 + $0x8] sm:$0xf]
  %v222 = vld [vmem:[%s2 + $0xc] sm:$0xf]
  %v227 = vunpack.c.l.b16 %v219
  %v228 = vunpack.c.l.b16 %v220
  %v229 = vunpack.c.l.b16 %v221
  %v230 = vunpack.c.l.b16 %v222
  %v231 = vpack.c.b16 %v228, %v227
  %v232 = vpack.c.b16 %v230, %v229
  %vm233 = vcmask 359424
  %v235 = vsel %vm233, %v231, 0
  %v238 = vsel %vm233, %v232, 0
  %vm240 = vcmask 1045504
  %v242 = vsel %vm240, %v218, 0
  %244 = vmatprep.subr.bf16.mxu0 0
  %245 = vmatpush1.bf16.msra.mxu0 %v216
  %246 = vmatprep.subr.bf16.mxu0 0
  %247 = vmatpush1.bf16.msra.mxu0 %v217
  %248 = vmatprep.subr.bf16.mxu0 0
  %249 = vmatpush1.bf16.msra.mxu0 %v242
  %250 = vmatprep.subr.bf16.mxu0 0
  %251 = vmatpush1.bf16.msra.mxu0 0
  %252 = vmatprep.subr.bf16.mxu0 0
  %253 = vmatpush1.bf16.msra.mxu0 0
  %254 = vmatprep.subr.bf16.mxu0 0
  %255 = vmatpush1.bf16.msra.mxu0 0
  %256 = vmatprep.subr.bf16.mxu0 0
  %257 = vmatpush1.bf16.msra.mxu0 0
  %258 = vmatprep.subr.bf16.mxu0 0
  %259 = vmatpush1.bf16.msra.mxu0 0
  %260 = vmatprep.subr.bf16.mxu0 0
  %261 = vmatpush1.bf16.msra.mxu0 0
  %262 = vmatprep.subr.bf16.mxu0 0
  %263 = vmatpush1.bf16.msra.mxu0 0
  %264 = vmatprep.subr.bf16.mxu0 0
  %265 = vmatpush1.bf16.msra.mxu0 0
  %266 = vmatprep.subr.bf16.mxu0 0
  %267 = vmatpush1.bf16.msra.mxu0 0
  %268 = vmatprep.subr.bf16.mxu0 0
  %269 = vmatpush1.bf16.msra.mxu0 0
  %270 = vmatprep.subr.bf16.mxu0 0
  %271 = vmatpush1.bf16.msra.mxu0 0
  %272 = vmatprep.subr.bf16.mxu0 0
  %273 = vmatpush1.bf16.msra.mxu0 0
  %274 = vmatprep.subr.bf16.mxu0 0
  %275 = vmatpush1.bf16.msra.mxu0 0
  %276 = vmatprep.mubr.bf16.mxu0 0
  %277 = vmatmul.mubr.bf16.gmra.mrb[0].mxu0 %v235
  %v278 = vpop.f32.mrb[0].mxu0
  %v279 = vadd.f32 0.0, %v278
  %v280 = vpop.f32.mrb[0].mxu0
  %v281 = vpop.f32.mrb[0].mxu0
  %v282 = vadd.f32 0.0, %v281
  %v283 = vpop.f32.mrb[0].mxu0
  %284 = vmatprep.mubr.bf16.mxu0 0
  %285 = vmatmul.mubr.bf16.gmra.mrb[0].mxu0 %v238
  %v286 = vpop.f32.mrb[0].mxu0
  %v287 = vadd.f32 0.0, %v286
  %v288 = vpop.f32.mrb[0].mxu0
  %v289 = vpop.f32.mrb[0].mxu0
  %v290 = vadd.f32 0.0, %v289
  %v291 = vpop.f32.mrb[0].mxu0
  %292 = vdwg.mxu0
  %v293 = vld [vmem:[%s3] sm:$0xff]
  %v294 = vld [vmem:[%s3 + $0x8] sm:$0xff]
  %v295 = vld [vmem:[%s3 + $0x10] sm:$0xff]
  %v296 = vld [vmem:[%s3 + $0x18] sm:$0xff]
  %v297 = vld [vmem:[%s4] sm:$0xff]
  %v298 = vld [vmem:[%s4 + $0x8] sm:$0xff]
  %v299 = vld [vmem:[%s4 + $0x10] sm:$0xff]
  %v300 = vld [vmem:[%s4 + $0x18] sm:$0xff]
  %vm301 = vcmask 261120
  %v302 = vsel %vm301, %v279, 0.0
  %303 = vadd.xlane.f32.xlu0 %v302
  %v304 = vpop.xlane.xlu0 %303
  %v305 = vsel %vm301, %v282, 0.0
  %306 = vadd.xlane.f32.xlu0 %v305
  %v307 = vpop.xlane.xlu0 %306
  %v308 = vsel %vm301, %v287, 0.0
  %309 = vadd.xlane.f32.xlu0 %v308
  %v310 = vpop.xlane.xlu0 %309
  %v311 = vsel %vm301, %v290, 0.0
  %312 = vadd.xlane.f32.xlu0 %v311
  %v313 = vpop.xlane.xlu0 %312
  %v314 = vmul.f32 %v304, 0.03125
  %v315 = vmul.f32 %v307, 0.03125
  %v316 = vmul.f32 %v310, 0.03125
  %v317 = vmul.f32 %v313, 0.03125
  %v318 = vsub.f32 %v279, %v314
  %v319 = vsub.f32 %v282, %v315
  %v320 = vsub.f32 %v287, %v316
  %v321 = vsub.f32 %v290, %v317
  %v322 = vmul.f32 %v318, %v318
  %v323 = vmul.f32 %v319, %v319
  %v324 = vmul.f32 %v320, %v320
  %v325 = vmul.f32 %v321, %v321
  %v326 = vsel %vm301, %v322, 0.0
  %327 = vadd.xlane.f32.xlu0 %v326
  %v328 = vpop.xlane.xlu0 %327
  %v329 = vsel %vm301, %v323, 0.0
  %330 = vadd.xlane.f32.xlu0 %v329
  %v331 = vpop.xlane.xlu0 %330
  %v332 = vsel %vm301, %v324, 0.0
  %333 = vadd.xlane.f32.xlu0 %v332
  %v334 = vpop.xlane.xlu0 %333
  %v335 = vsel %vm301, %v325, 0.0
  %336 = vadd.xlane.f32.xlu0 %v335
  %v337 = vpop.xlane.xlu0 %336
  %v338 = vmul.f32 %v328, 0.03125
  %v339 = vmul.f32 %v331, 0.03125
  %v340 = vmul.f32 %v334, 0.03125
  %v341 = vmul.f32 %v337, 0.03125
  %v342 = vadd.f32 %v338, 1e-05
  %v343 = vadd.f32 %v339, 1e-05
  %v344 = vadd.f32 %v340, 1e-05
  %v345 = vadd.f32 %v341, 1e-05
  %v346 = vrsqrt.pop %v342
  %v347 = vrsqrt.pop %v343
  %v348 = vrsqrt.pop %v344
  %v349 = vrsqrt.pop %v345
  %v350 = vmul.f32 %v293, %v346
  %v351 = vmul.f32 %v294, %v347
  %v352 = vmul.f32 %v295, %v348
  %v353 = vmul.f32 %v296, %v349
  %v354 = vmul.f32 %v314, %v350
  %v355 = vmul.f32 %v315, %v351
  %v356 = vmul.f32 %v316, %v352
  %v357 = vmul.f32 %v317, %v353
  %v358 = vsub.f32 %v297, %v354
  %v359 = vsub.f32 %v298, %v355
  %v360 = vsub.f32 %v299, %v356
  %v361 = vsub.f32 %v300, %v357
  %363 = vset.pattern.permute.xlu0 0
  %364 = vperm.xlu0 %363, %v350
  %v365 = vpop.permute.xlu0 %364
  %368 = vset.pattern.permute.xlu0 0
  %369 = vperm.xlu0 %368, %v351
  %v370 = vpop.permute.xlu0 %369
  %373 = vset.pattern.permute.xlu0 0
  %374 = vperm.xlu0 %373, %v352
  %v375 = vpop.permute.xlu0 %374
  %378 = vset.pattern.permute.xlu0 0
  %379 = vperm.xlu0 %378, %v353
  %v380 = vpop.permute.xlu0 %379
  %v382 = vmul.f32 %v279, %v365
  %v383 = vmul.f32 %v282, %v370
  %v384 = vmul.f32 %v287, %v375
  %v385 = vmul.f32 %v290, %v380
  %387 = vset.pattern.permute.xlu0 0
  %388 = vperm.xlu0 %387, %v358
  %v389 = vpop.permute.xlu0 %388
  %392 = vset.pattern.permute.xlu0 0
  %393 = vperm.xlu0 %392, %v359
  %v394 = vpop.permute.xlu0 %393
  %397 = vset.pattern.permute.xlu0 0
  %398 = vperm.xlu0 %397, %v360
  %v399 = vpop.permute.xlu0 %398
  %402 = vset.pattern.permute.xlu0 0
  %403 = vperm.xlu0 %402, %v361
  %v404 = vpop.permute.xlu0 %403
  %v406 = vadd.f32 %v382, %v389
  %v407 = vadd.f32 %v383, %v394
  %v408 = vadd.f32 %v384, %v399
  %v409 = vadd.f32 %v385, %v404
  %v410 = vmax.f32 %v406, 0.0
  %v411 = vmax.f32 %v407, 0.0
  %v412 = vmax.f32 %v408, 0.0
  %v413 = vmax.f32 %v409, 0.0
  %418 = vrot.lane.b32.xlu0 %v410, 2
  %v419 = vpop.permute.xlu0 %418
  %420 = vrot.lane.b32.xlu0 %v411, 2
  %v421 = vpop.permute.xlu0 %420
  %422 = vrot.lane.b32.xlu0 %v412, 2
  %v423 = vpop.permute.xlu0 %422
  %424 = vrot.lane.b32.xlu0 %v413, 2
  %v425 = vpop.permute.xlu0 %424
  %v430 = vsel %vm108, 0.0, %v419
  %v431 = vsel %vm108, 0.0, %v421
  %v432 = vsel %vm108, 0.0, %v423
  %v433 = vsel %vm108, 0.0, %v425
  %v434 = vsel %vm116, %v430, 0.0
  %v435 = vsel %vm116, %v431, 0.0
  %v436 = vsel %vm116, %v432, 0.0
  %v437 = vsel %vm116, %v433, 0.0
  %438 = vrot.lane.b32.xlu0 %v410, 1
  %v439 = vpop.permute.xlu0 %438
  %440 = vrot.lane.b32.xlu0 %v411, 1
  %v441 = vpop.permute.xlu0 %440
  %442 = vrot.lane.b32.xlu0 %v412, 1
  %v443 = vpop.permute.xlu0 %442
  %444 = vrot.lane.b32.xlu0 %v413, 1
  %v445 = vpop.permute.xlu0 %444
  %v450 = vsel %vm121, 0.0, %v439
  %v451 = vsel %vm121, 0.0, %v441
  %v452 = vsel %vm121, 0.0, %v443
  %v453 = vsel %vm121, 0.0, %v445
  %v454 = vsel %vm129, %v450, 0.0
  %v455 = vsel %vm129, %v451, 0.0
  %v456 = vsel %vm129, %v452, 0.0
  %v457 = vsel %vm129, %v453, 0.0
  %458 = vrot.lane.b32.xlu0 %v410, 127
  %v459 = vpop.permute.xlu0 %458
  %460 = vrot.lane.b32.xlu0 %v411, 127
  %v461 = vpop.permute.xlu0 %460
  %462 = vrot.lane.b32.xlu0 %v412, 127
  %v463 = vpop.permute.xlu0 %462
  %464 = vrot.lane.b32.xlu0 %v413, 127
  %v465 = vpop.permute.xlu0 %464
  %v470 = vsel %vm134, %v459, 0.0
  %v471 = vsel %vm134, %v461, 0.0
  %v472 = vsel %vm134, %v463, 0.0
  %v473 = vsel %vm134, %v465, 0.0
  %v474 = vsel %vm142, %v470, 0.0
  %v475 = vsel %vm142, %v471, 0.0
  %v476 = vsel %vm142, %v472, 0.0
  %v477 = vsel %vm142, %v473, 0.0
  %478 = vrot.lane.b32.xlu0 %v410, 126
  %v479 = vpop.permute.xlu0 %478
  %480 = vrot.lane.b32.xlu0 %v411, 126
  %v481 = vpop.permute.xlu0 %480
  %482 = vrot.lane.b32.xlu0 %v412, 126
  %v483 = vpop.permute.xlu0 %482
  %484 = vrot.lane.b32.xlu0 %v413, 126
  %v485 = vpop.permute.xlu0 %484
  %v490 = vsel %vm147, %v479, 0.0
  %v491 = vsel %vm147, %v481, 0.0
  %v492 = vsel %vm147, %v483, 0.0
  %v493 = vsel %vm147, %v485, 0.0
  %v494 = vsel %vm155, %v490, 0.0
  %v495 = vsel %vm155, %v491, 0.0
  %v496 = vsel %vm155, %v492, 0.0
  %v497 = vsel %vm155, %v493, 0.0
  %v498 = vpack.c.bf16 %v435, %v434
  %v499 = vpack.c.bf16 %v437, %v436
  %v500 = vpack.c.bf16 %v455, %v454
  %v501 = vpack.c.bf16 %v457, %v456
  %v502 = vpack.c.bf16 %v411, %v410
  %v503 = vpack.c.bf16 %v413, %v412
  %v504 = vpack.c.bf16 %v475, %v474
  %v505 = vpack.c.bf16 %v477, %v476
  %v506 = vpack.c.bf16 %v495, %v494
  %v507 = vpack.c.bf16 %v497, %v496
  %v508 = vld [vmem:[%s5] sm:$0xff]
  %v509 = vld [vmem:[%s5 + $0x8] sm:$0xff]
  %v510 = vld [vmem:[%s5 + $0x10] sm:$0xff]
  %v511 = vld [vmem:[%s5 + $0x18] sm:$0xff]
  %v516 = vunpack.c.l.b16 %v508
  %v517 = vunpack.c.h.b16 %v508
  %v518 = vunpack.c.l.b16 %v509
  %v519 = vunpack.c.h.b16 %v509
  %v520 = vunpack.c.l.b16 %v510
  %v521 = vunpack.c.h.b16 %v510
  %v522 = vunpack.c.l.b16 %v511
  %v523 = vunpack.c.h.b16 %v511
  %v524 = vpack.c.b16 %v518, %v516
  %v525 = vpack.c.b16 %v519, %v517
  %v526 = vpack.c.b16 %v522, %v520
  %v527 = vpack.c.b16 %v523, %v521
  %v531 = vsel %vm301, %v525, 0
  %v534 = vsel %vm301, %v527, 0
  %536 = vmatprep.subr.bf16.mxu0 0
  %537 = vmatpush1.bf16.msra.mxu0 %v498
  %538 = vmatprep.subr.bf16.mxu0 0
  %539 = vmatpush1.bf16.msra.mxu0 %v499
  %540 = vmatprep.subr.bf16.mxu0 0
  %541 = vmatpush1.bf16.msra.mxu0 %v500
  %542 = vmatprep.subr.bf16.mxu0 0
  %543 = vmatpush1.bf16.msra.mxu0 %v501
  %544 = vmatprep.subr.bf16.mxu0 0
  %545 = vmatpush1.bf16.msra.mxu0 %v502
  %546 = vmatprep.subr.bf16.mxu0 0
  %547 = vmatpush1.bf16.msra.mxu0 %v503
  %548 = vmatprep.subr.bf16.mxu0 0
  %549 = vmatpush1.bf16.msra.mxu0 %v504
  %550 = vmatprep.subr.bf16.mxu0 0
  %551 = vmatpush1.bf16.msra.mxu0 %v505
  %552 = vmatprep.subr.bf16.mxu0 0
  %553 = vmatpush1.bf16.msra.mxu0 %v506
  %554 = vmatprep.subr.bf16.mxu0 0
  %555 = vmatpush1.bf16.msra.mxu0 %v507
  %556 = vmatprep.subr.bf16.mxu0 0
  %557 = vmatpush1.bf16.msra.mxu0 0
  %558 = vmatprep.subr.bf16.mxu0 0
  %559 = vmatpush1.bf16.msra.mxu0 0
  %560 = vmatprep.subr.bf16.mxu0 0
  %561 = vmatpush1.bf16.msra.mxu0 0
  %562 = vmatprep.subr.bf16.mxu0 0
  %563 = vmatpush1.bf16.msra.mxu0 0
  %564 = vmatprep.subr.bf16.mxu0 0
  %565 = vmatpush1.bf16.msra.mxu0 0
  %566 = vmatprep.subr.bf16.mxu0 0
  %567 = vmatpush1.bf16.msra.mxu0 0
  %568 = vmatprep.mubr.bf16.mxu0 %v531
  %569 = vmatmul.mubr.bf16.gmra.mrb[0].mxu0 %v524
  %v570 = vpop.f32.mrb[0].mxu0
  %v571 = vadd.f32 0.0, %v570
  %v572 = vpop.f32.mrb[0].mxu0
  %v573 = vpop.f32.mrb[0].mxu0
  %v574 = vadd.f32 0.0, %v573
  %v575 = vpop.f32.mrb[0].mxu0
  %576 = vmatprep.mubr.bf16.mxu0 %v534
  %577 = vmatmul.mubr.bf16.gmra.mrb[0].mxu0 %v526
  %v578 = vpop.f32.mrb[0].mxu0
  %v579 = vadd.f32 0.0, %v578
  %v580 = vpop.f32.mrb[0].mxu0
  %v581 = vpop.f32.mrb[0].mxu0
  %v582 = vadd.f32 0.0, %v581
  %v583 = vpop.f32.mrb[0].mxu0
  %584 = vdwg.mxu0
  %v585 = vld [vmem:[%s6] sm:$0xff]
  %v586 = vld [vmem:[%s6 + $0x8] sm:$0xff]
  %v587 = vld [vmem:[%s6 + $0x10] sm:$0xff]
  %v588 = vld [vmem:[%s6 + $0x18] sm:$0xff]
  %v589 = vld [vmem:[%s7] sm:$0xff]
  %v590 = vld [vmem:[%s7 + $0x8] sm:$0xff]
  %v591 = vld [vmem:[%s7 + $0x10] sm:$0xff]
  %v592 = vld [vmem:[%s7 + $0x18] sm:$0xff]
  %v593 = vsel %vm301, %v571, 0.0
  %594 = vadd.xlane.f32.xlu0 %v593
  %v595 = vpop.xlane.xlu0 %594
  %v596 = vsel %vm301, %v574, 0.0
  %597 = vadd.xlane.f32.xlu0 %v596
  %v598 = vpop.xlane.xlu0 %597
  %v599 = vsel %vm301, %v579, 0.0
  %600 = vadd.xlane.f32.xlu0 %v599
  %v601 = vpop.xlane.xlu0 %600
  %v602 = vsel %vm301, %v582, 0.0
  %603 = vadd.xlane.f32.xlu0 %v602
  %v604 = vpop.xlane.xlu0 %603
  %v605 = vmul.f32 %v595, 0.03125
  %v606 = vmul.f32 %v598, 0.03125
  %v607 = vmul.f32 %v601, 0.03125
  %v608 = vmul.f32 %v604, 0.03125
  %v609 = vsub.f32 %v571, %v605
  %v610 = vsub.f32 %v574, %v606
  %v611 = vsub.f32 %v579, %v607
  %v612 = vsub.f32 %v582, %v608
  %v613 = vmul.f32 %v609, %v609
  %v614 = vmul.f32 %v610, %v610
  %v615 = vmul.f32 %v611, %v611
  %v616 = vmul.f32 %v612, %v612
  %v617 = vsel %vm301, %v613, 0.0
  %618 = vadd.xlane.f32.xlu0 %v617
  %v619 = vpop.xlane.xlu0 %618
  %v620 = vsel %vm301, %v614, 0.0
  %621 = vadd.xlane.f32.xlu0 %v620
  %v622 = vpop.xlane.xlu0 %621
  %v623 = vsel %vm301, %v615, 0.0
  %624 = vadd.xlane.f32.xlu0 %v623
  %v625 = vpop.xlane.xlu0 %624
  %v626 = vsel %vm301, %v616, 0.0
  %627 = vadd.xlane.f32.xlu0 %v626
  %v628 = vpop.xlane.xlu0 %627
  %v629 = vmul.f32 %v619, 0.03125
  %v630 = vmul.f32 %v622, 0.03125
  %v631 = vmul.f32 %v625, 0.03125
  %v632 = vmul.f32 %v628, 0.03125
  %v633 = vadd.f32 %v629, 1e-05
  %v634 = vadd.f32 %v630, 1e-05
  %v635 = vadd.f32 %v631, 1e-05
  %v636 = vadd.f32 %v632, 1e-05
  %v637 = vrsqrt.pop %v633
  %v638 = vrsqrt.pop %v634
  %v639 = vrsqrt.pop %v635
  %v640 = vrsqrt.pop %v636
  %v641 = vmul.f32 %v585, %v637
  %v642 = vmul.f32 %v586, %v638
  %v643 = vmul.f32 %v587, %v639
  %v644 = vmul.f32 %v588, %v640
  %v645 = vmul.f32 %v605, %v641
  %v646 = vmul.f32 %v606, %v642
  %v647 = vmul.f32 %v607, %v643
  %v648 = vmul.f32 %v608, %v644
  %v649 = vsub.f32 %v589, %v645
  %v650 = vsub.f32 %v590, %v646
  %v651 = vsub.f32 %v591, %v647
  %v652 = vsub.f32 %v592, %v648
  %654 = vset.pattern.permute.xlu0 0
  %655 = vperm.xlu0 %654, %v641
  %v656 = vpop.permute.xlu0 %655
  %659 = vset.pattern.permute.xlu0 0
  %660 = vperm.xlu0 %659, %v642
  %v661 = vpop.permute.xlu0 %660
  %664 = vset.pattern.permute.xlu0 0
  %665 = vperm.xlu0 %664, %v643
  %v666 = vpop.permute.xlu0 %665
  %669 = vset.pattern.permute.xlu0 0
  %670 = vperm.xlu0 %669, %v644
  %v671 = vpop.permute.xlu0 %670
  %v673 = vmul.f32 %v571, %v656
  %v674 = vmul.f32 %v574, %v661
  %v675 = vmul.f32 %v579, %v666
  %v676 = vmul.f32 %v582, %v671
  %678 = vset.pattern.permute.xlu0 0
  %679 = vperm.xlu0 %678, %v649
  %v680 = vpop.permute.xlu0 %679
  %683 = vset.pattern.permute.xlu0 0
  %684 = vperm.xlu0 %683, %v650
  %v685 = vpop.permute.xlu0 %684
  %688 = vset.pattern.permute.xlu0 0
  %689 = vperm.xlu0 %688, %v651
  %v690 = vpop.permute.xlu0 %689
  %693 = vset.pattern.permute.xlu0 0
  %694 = vperm.xlu0 %693, %v652
  %v695 = vpop.permute.xlu0 %694
  %v697 = vadd.f32 %v673, %v680
  %v698 = vadd.f32 %v674, %v685
  %v699 = vadd.f32 %v675, %v690
  %v700 = vadd.f32 %v676, %v695
  %v701 = vmax.f32 %v697, 0.0
  %v702 = vmax.f32 %v698, 0.0
  %v703 = vmax.f32 %v699, 0.0
  %v704 = vmax.f32 %v700, 0.0
  %709 = vrot.lane.b32.xlu0 %v701, 2
  %v710 = vpop.permute.xlu0 %709
  %711 = vrot.lane.b32.xlu0 %v702, 2
  %v712 = vpop.permute.xlu0 %711
  %713 = vrot.lane.b32.xlu0 %v703, 2
  %v714 = vpop.permute.xlu0 %713
  %715 = vrot.lane.b32.xlu0 %v704, 2
  %v716 = vpop.permute.xlu0 %715
  %v721 = vsel %vm108, 0.0, %v710
  %v722 = vsel %vm108, 0.0, %v712
  %v723 = vsel %vm108, 0.0, %v714
  %v724 = vsel %vm108, 0.0, %v716
  %v725 = vsel %vm116, %v721, 0.0
  %v726 = vsel %vm116, %v722, 0.0
  %v727 = vsel %vm116, %v723, 0.0
  %v728 = vsel %vm116, %v724, 0.0
  %729 = vrot.lane.b32.xlu0 %v701, 1
  %v730 = vpop.permute.xlu0 %729
  %731 = vrot.lane.b32.xlu0 %v702, 1
  %v732 = vpop.permute.xlu0 %731
  %733 = vrot.lane.b32.xlu0 %v703, 1
  %v734 = vpop.permute.xlu0 %733
  %735 = vrot.lane.b32.xlu0 %v704, 1
  %v736 = vpop.permute.xlu0 %735
  %v741 = vsel %vm121, 0.0, %v730
  %v742 = vsel %vm121, 0.0, %v732
  %v743 = vsel %vm121, 0.0, %v734
  %v744 = vsel %vm121, 0.0, %v736
  %v745 = vsel %vm129, %v741, 0.0
  %v746 = vsel %vm129, %v742, 0.0
  %v747 = vsel %vm129, %v743, 0.0
  %v748 = vsel %vm129, %v744, 0.0
  %749 = vrot.lane.b32.xlu0 %v701, 127
  %v750 = vpop.permute.xlu0 %749
  %751 = vrot.lane.b32.xlu0 %v702, 127
  %v752 = vpop.permute.xlu0 %751
  %753 = vrot.lane.b32.xlu0 %v703, 127
  %v754 = vpop.permute.xlu0 %753
  %755 = vrot.lane.b32.xlu0 %v704, 127
  %v756 = vpop.permute.xlu0 %755
  %v761 = vsel %vm134, %v750, 0.0
  %v762 = vsel %vm134, %v752, 0.0
  %v763 = vsel %vm134, %v754, 0.0
  %v764 = vsel %vm134, %v756, 0.0
  %v765 = vsel %vm142, %v761, 0.0
  %v766 = vsel %vm142, %v762, 0.0
  %v767 = vsel %vm142, %v763, 0.0
  %v768 = vsel %vm142, %v764, 0.0
  %769 = vrot.lane.b32.xlu0 %v701, 126
  %v770 = vpop.permute.xlu0 %769
  %771 = vrot.lane.b32.xlu0 %v702, 126
  %v772 = vpop.permute.xlu0 %771
  %773 = vrot.lane.b32.xlu0 %v703, 126
  %v774 = vpop.permute.xlu0 %773
  %775 = vrot.lane.b32.xlu0 %v704, 126
  %v776 = vpop.permute.xlu0 %775
  %v781 = vsel %vm147, %v770, 0.0
  %v782 = vsel %vm147, %v772, 0.0
  %v783 = vsel %vm147, %v774, 0.0
  %v784 = vsel %vm147, %v776, 0.0
  %v785 = vsel %vm155, %v781, 0.0
  %v786 = vsel %vm155, %v782, 0.0
  %v787 = vsel %vm155, %v783, 0.0
  %v788 = vsel %vm155, %v784, 0.0
  %v789 = vpack.c.bf16 %v726, %v725
  %v790 = vpack.c.bf16 %v728, %v727
  %v791 = vpack.c.bf16 %v746, %v745
  %v792 = vpack.c.bf16 %v748, %v747
  %v793 = vpack.c.bf16 %v702, %v701
  %v794 = vpack.c.bf16 %v704, %v703
  %v795 = vpack.c.bf16 %v766, %v765
  %v796 = vpack.c.bf16 %v768, %v767
  %v797 = vpack.c.bf16 %v786, %v785
  %v798 = vpack.c.bf16 %v788, %v787
  %v799 = vld [vmem:[%s8] sm:$0xff]
  %v800 = vld [vmem:[%s8 + $0x8] sm:$0xff]
  %v801 = vld [vmem:[%s8 + $0x10] sm:$0xff]
  %v802 = vld [vmem:[%s8 + $0x18] sm:$0xff]
  %v807 = vunpack.c.l.b16 %v799
  %v808 = vunpack.c.h.b16 %v799
  %v809 = vunpack.c.l.b16 %v800
  %v810 = vunpack.c.h.b16 %v800
  %v811 = vunpack.c.l.b16 %v801
  %v812 = vunpack.c.h.b16 %v801
  %v813 = vunpack.c.l.b16 %v802
  %v814 = vunpack.c.h.b16 %v802
  %v815 = vpack.c.b16 %v809, %v807
  %v816 = vpack.c.b16 %v810, %v808
  %v817 = vpack.c.b16 %v813, %v811
  %v818 = vpack.c.b16 %v814, %v812
  %v822 = vsel %vm301, %v816, 0
  %v825 = vsel %vm301, %v818, 0
  %827 = vmatprep.subr.bf16.mxu0 0
  %828 = vmatpush1.bf16.msra.mxu0 %v789
  %829 = vmatprep.subr.bf16.mxu0 0
  %830 = vmatpush1.bf16.msra.mxu0 %v790
  %831 = vmatprep.subr.bf16.mxu0 0
  %832 = vmatpush1.bf16.msra.mxu0 %v791
  %833 = vmatprep.subr.bf16.mxu0 0
  %834 = vmatpush1.bf16.msra.mxu0 %v792
  %835 = vmatprep.subr.bf16.mxu0 0
  %836 = vmatpush1.bf16.msra.mxu0 %v793
  %837 = vmatprep.subr.bf16.mxu0 0
  %838 = vmatpush1.bf16.msra.mxu0 %v794
  %839 = vmatprep.subr.bf16.mxu0 0
  %840 = vmatpush1.bf16.msra.mxu0 %v795
  %841 = vmatprep.subr.bf16.mxu0 0
  %842 = vmatpush1.bf16.msra.mxu0 %v796
  %843 = vmatprep.subr.bf16.mxu0 0
  %844 = vmatpush1.bf16.msra.mxu0 %v797
  %845 = vmatprep.subr.bf16.mxu0 0
  %846 = vmatpush1.bf16.msra.mxu0 %v798
  %847 = vmatprep.subr.bf16.mxu0 0
  %848 = vmatpush1.bf16.msra.mxu0 0
  %849 = vmatprep.subr.bf16.mxu0 0
  %850 = vmatpush1.bf16.msra.mxu0 0
  %851 = vmatprep.subr.bf16.mxu0 0
  %852 = vmatpush1.bf16.msra.mxu0 0
  %853 = vmatprep.subr.bf16.mxu0 0
  %854 = vmatpush1.bf16.msra.mxu0 0
  %855 = vmatprep.subr.bf16.mxu0 0
  %856 = vmatpush1.bf16.msra.mxu0 0
  %857 = vmatprep.subr.bf16.mxu0 0
  %858 = vmatpush1.bf16.msra.mxu0 0
  %859 = vmatprep.mubr.bf16.mxu0 %v822
  %860 = vmatmul.mubr.bf16.gmra.mrb[0].mxu0 %v815
  %v861 = vpop.f32.mrb[0].mxu0
  %v862 = vadd.f32 0.0, %v861
  %v863 = vpop.f32.mrb[0].mxu0
  %v864 = vpop.f32.mrb[0].mxu0
  %v865 = vadd.f32 0.0, %v864
  %v866 = vpop.f32.mrb[0].mxu0
  %867 = vmatprep.mubr.bf16.mxu0 %v825
  %868 = vmatmul.mubr.bf16.gmra.mrb[0].mxu0 %v817
  %v869 = vpop.f32.mrb[0].mxu0
  %v870 = vadd.f32 0.0, %v869
  %v871 = vpop.f32.mrb[0].mxu0
  %v872 = vpop.f32.mrb[0].mxu0
  %v873 = vadd.f32 0.0, %v872
  %v874 = vpop.f32.mrb[0].mxu0
  %875 = vdwg.mxu0
  %v876 = vld [vmem:[%s9] sm:$0xff]
  %v877 = vld [vmem:[%s9 + $0x8] sm:$0xff]
  %v878 = vld [vmem:[%s9 + $0x10] sm:$0xff]
  %v879 = vld [vmem:[%s9 + $0x18] sm:$0xff]
  %v880 = vld [vmem:[%s10] sm:$0xff]
  %v881 = vld [vmem:[%s10 + $0x8] sm:$0xff]
  %v882 = vld [vmem:[%s10 + $0x10] sm:$0xff]
  %v883 = vld [vmem:[%s10 + $0x18] sm:$0xff]
  %v884 = vsel %vm301, %v862, 0.0
  %885 = vadd.xlane.f32.xlu0 %v884
  %v886 = vpop.xlane.xlu0 %885
  %v887 = vsel %vm301, %v865, 0.0
  %888 = vadd.xlane.f32.xlu0 %v887
  %v889 = vpop.xlane.xlu0 %888
  %v890 = vsel %vm301, %v870, 0.0
  %891 = vadd.xlane.f32.xlu0 %v890
  %v892 = vpop.xlane.xlu0 %891
  %v893 = vsel %vm301, %v873, 0.0
  %894 = vadd.xlane.f32.xlu0 %v893
  %v895 = vpop.xlane.xlu0 %894
  %v896 = vmul.f32 %v886, 0.03125
  %v897 = vmul.f32 %v889, 0.03125
  %v898 = vmul.f32 %v892, 0.03125
  %v899 = vmul.f32 %v895, 0.03125
  %v900 = vsub.f32 %v862, %v896
  %v901 = vsub.f32 %v865, %v897
  %v902 = vsub.f32 %v870, %v898
  %v903 = vsub.f32 %v873, %v899
  %v904 = vmul.f32 %v900, %v900
  %v905 = vmul.f32 %v901, %v901
  %v906 = vmul.f32 %v902, %v902
  %v907 = vmul.f32 %v903, %v903
  %v908 = vsel %vm301, %v904, 0.0
  %909 = vadd.xlane.f32.xlu0 %v908
  %v910 = vpop.xlane.xlu0 %909
  %v911 = vsel %vm301, %v905, 0.0
  %912 = vadd.xlane.f32.xlu0 %v911
  %v913 = vpop.xlane.xlu0 %912
  %v914 = vsel %vm301, %v906, 0.0
  %915 = vadd.xlane.f32.xlu0 %v914
  %v916 = vpop.xlane.xlu0 %915
  %v917 = vsel %vm301, %v907, 0.0
  %918 = vadd.xlane.f32.xlu0 %v917
  %v919 = vpop.xlane.xlu0 %918
  %v920 = vmul.f32 %v910, 0.03125
  %v921 = vmul.f32 %v913, 0.03125
  %v922 = vmul.f32 %v916, 0.03125
  %v923 = vmul.f32 %v919, 0.03125
  %v924 = vadd.f32 %v920, 1e-05
  %v925 = vadd.f32 %v921, 1e-05
  %v926 = vadd.f32 %v922, 1e-05
  %v927 = vadd.f32 %v923, 1e-05
  %v928 = vrsqrt.pop %v924
  %v929 = vrsqrt.pop %v925
  %v930 = vrsqrt.pop %v926
  %v931 = vrsqrt.pop %v927
  %v932 = vmul.f32 %v876, %v928
  %v933 = vmul.f32 %v877, %v929
  %v934 = vmul.f32 %v878, %v930
  %v935 = vmul.f32 %v879, %v931
  %v936 = vmul.f32 %v896, %v932
  %v937 = vmul.f32 %v897, %v933
  %v938 = vmul.f32 %v898, %v934
  %v939 = vmul.f32 %v899, %v935
  %v940 = vsub.f32 %v880, %v936
  %v941 = vsub.f32 %v881, %v937
  %v942 = vsub.f32 %v882, %v938
  %v943 = vsub.f32 %v883, %v939
  %945 = vset.pattern.permute.xlu0 0
  %946 = vperm.xlu0 %945, %v932
  %v947 = vpop.permute.xlu0 %946
  %950 = vset.pattern.permute.xlu0 0
  %951 = vperm.xlu0 %950, %v933
  %v952 = vpop.permute.xlu0 %951
  %955 = vset.pattern.permute.xlu0 0
  %956 = vperm.xlu0 %955, %v934
  %v957 = vpop.permute.xlu0 %956
  %960 = vset.pattern.permute.xlu0 0
  %961 = vperm.xlu0 %960, %v935
  %v962 = vpop.permute.xlu0 %961
  %v964 = vmul.f32 %v862, %v947
  %v965 = vmul.f32 %v865, %v952
  %v966 = vmul.f32 %v870, %v957
  %v967 = vmul.f32 %v873, %v962
  %969 = vset.pattern.permute.xlu0 0
  %970 = vperm.xlu0 %969, %v940
  %v971 = vpop.permute.xlu0 %970
  %974 = vset.pattern.permute.xlu0 0
  %975 = vperm.xlu0 %974, %v941
  %v976 = vpop.permute.xlu0 %975
  %979 = vset.pattern.permute.xlu0 0
  %980 = vperm.xlu0 %979, %v942
  %v981 = vpop.permute.xlu0 %980
  %984 = vset.pattern.permute.xlu0 0
  %985 = vperm.xlu0 %984, %v943
  %v986 = vpop.permute.xlu0 %985
  %v988 = vadd.f32 %v964, %v971
  %v989 = vadd.f32 %v965, %v976
  %v990 = vadd.f32 %v966, %v981
  %v991 = vadd.f32 %v967, %v986
  %v992 = vadd.f32 %v410, %v988
  %v993 = vadd.f32 %v411, %v989
  %v994 = vadd.f32 %v412, %v990
  %v995 = vadd.f32 %v413, %v991
  %1000 = vrot.lane.b32.xlu0 %v992, 2
  %v1001 = vpop.permute.xlu0 %1000
  %1002 = vrot.lane.b32.xlu0 %v993, 2
  %v1003 = vpop.permute.xlu0 %1002
  %1004 = vrot.lane.b32.xlu0 %v994, 2
  %v1005 = vpop.permute.xlu0 %1004
  %1006 = vrot.lane.b32.xlu0 %v995, 2
  %v1007 = vpop.permute.xlu0 %1006
  %v1012 = vsel %vm108, 0.0, %v1001
  %v1013 = vsel %vm108, 0.0, %v1003
  %v1014 = vsel %vm108, 0.0, %v1005
  %v1015 = vsel %vm108, 0.0, %v1007
  %v1016 = vsel %vm116, %v1012, 0.0
  %v1017 = vsel %vm116, %v1013, 0.0
  %v1018 = vsel %vm116, %v1014, 0.0
  %v1019 = vsel %vm116, %v1015, 0.0
  %1020 = vrot.lane.b32.xlu0 %v992, 1
  %v1021 = vpop.permute.xlu0 %1020
  %1022 = vrot.lane.b32.xlu0 %v993, 1
  %v1023 = vpop.permute.xlu0 %1022
  %1024 = vrot.lane.b32.xlu0 %v994, 1
  %v1025 = vpop.permute.xlu0 %1024
  %1026 = vrot.lane.b32.xlu0 %v995, 1
  %v1027 = vpop.permute.xlu0 %1026
  %v1032 = vsel %vm121, 0.0, %v1021
  %v1033 = vsel %vm121, 0.0, %v1023
  %v1034 = vsel %vm121, 0.0, %v1025
  %v1035 = vsel %vm121, 0.0, %v1027
  %v1036 = vsel %vm129, %v1032, 0.0
  %v1037 = vsel %vm129, %v1033, 0.0
  %v1038 = vsel %vm129, %v1034, 0.0
  %v1039 = vsel %vm129, %v1035, 0.0
  %1040 = vrot.lane.b32.xlu0 %v992, 127
  %v1041 = vpop.permute.xlu0 %1040
  %1042 = vrot.lane.b32.xlu0 %v993, 127
  %v1043 = vpop.permute.xlu0 %1042
  %1044 = vrot.lane.b32.xlu0 %v994, 127
  %v1045 = vpop.permute.xlu0 %1044
  %1046 = vrot.lane.b32.xlu0 %v995, 127
  %v1047 = vpop.permute.xlu0 %1046
  %v1052 = vsel %vm134, %v1041, 0.0
  %v1053 = vsel %vm134, %v1043, 0.0
  %v1054 = vsel %vm134, %v1045, 0.0
  %v1055 = vsel %vm134, %v1047, 0.0
  %v1056 = vsel %vm142, %v1052, 0.0
  %v1057 = vsel %vm142, %v1053, 0.0
  %v1058 = vsel %vm142, %v1054, 0.0
  %v1059 = vsel %vm142, %v1055, 0.0
  %1060 = vrot.lane.b32.xlu0 %v992, 126
  %v1061 = vpop.permute.xlu0 %1060
  %1062 = vrot.lane.b32.xlu0 %v993, 126
  %v1063 = vpop.permute.xlu0 %1062
  %1064 = vrot.lane.b32.xlu0 %v994, 126
  %v1065 = vpop.permute.xlu0 %1064
  %1066 = vrot.lane.b32.xlu0 %v995, 126
  %v1067 = vpop.permute.xlu0 %1066
  %v1072 = vsel %vm147, %v1061, 0.0
  %v1073 = vsel %vm147, %v1063, 0.0
  %v1074 = vsel %vm147, %v1065, 0.0
  %v1075 = vsel %vm147, %v1067, 0.0
  %v1076 = vsel %vm155, %v1072, 0.0
  %v1077 = vsel %vm155, %v1073, 0.0
  %v1078 = vsel %vm155, %v1074, 0.0
  %v1079 = vsel %vm155, %v1075, 0.0
  %v1080 = vpack.c.bf16 %v1017, %v1016
  %v1081 = vpack.c.bf16 %v1019, %v1018
  %v1082 = vpack.c.bf16 %v1037, %v1036
  %v1083 = vpack.c.bf16 %v1039, %v1038
  %v1084 = vpack.c.bf16 %v993, %v992
  %v1085 = vpack.c.bf16 %v995, %v994
  %v1086 = vpack.c.bf16 %v1057, %v1056
  %v1087 = vpack.c.bf16 %v1059, %v1058
  %v1088 = vpack.c.bf16 %v1077, %v1076
  %v1089 = vpack.c.bf16 %v1079, %v1078
  %v1090 = vld [vmem:[%s11] sm:$0xff]
  %v1091 = vld [vmem:[%s11 + $0x8] sm:$0xff]
  %v1092 = vld [vmem:[%s11 + $0x10] sm:$0xff]
  %v1093 = vld [vmem:[%s11 + $0x18] sm:$0xff]
  %v1098 = vunpack.c.l.b16 %v1090
  %v1099 = vunpack.c.h.b16 %v1090
  %v1100 = vunpack.c.l.b16 %v1091
  %v1101 = vunpack.c.h.b16 %v1091
  %v1102 = vunpack.c.l.b16 %v1092
  %v1103 = vunpack.c.h.b16 %v1092
  %v1104 = vunpack.c.l.b16 %v1093
  %v1105 = vunpack.c.h.b16 %v1093
  %v1106 = vpack.c.b16 %v1100, %v1098
  %v1107 = vpack.c.b16 %v1101, %v1099
  %v1108 = vpack.c.b16 %v1104, %v1102
  %v1109 = vpack.c.b16 %v1105, %v1103
  %v1113 = vsel %vm301, %v1107, 0
  %v1116 = vsel %vm301, %v1109, 0
  %1118 = vmatprep.subr.bf16.mxu0 0
  %1119 = vmatpush1.bf16.msra.mxu0 %v1080
  %1120 = vmatprep.subr.bf16.mxu0 0
  %1121 = vmatpush1.bf16.msra.mxu0 %v1081
  %1122 = vmatprep.subr.bf16.mxu0 0
  %1123 = vmatpush1.bf16.msra.mxu0 %v1082
  %1124 = vmatprep.subr.bf16.mxu0 0
  %1125 = vmatpush1.bf16.msra.mxu0 %v1083
  %1126 = vmatprep.subr.bf16.mxu0 0
  %1127 = vmatpush1.bf16.msra.mxu0 %v1084
  %1128 = vmatprep.subr.bf16.mxu0 0
  %1129 = vmatpush1.bf16.msra.mxu0 %v1085
  %1130 = vmatprep.subr.bf16.mxu0 0
  %1131 = vmatpush1.bf16.msra.mxu0 %v1086
  %1132 = vmatprep.subr.bf16.mxu0 0
  %1133 = vmatpush1.bf16.msra.mxu0 %v1087
  %1134 = vmatprep.subr.bf16.mxu0 0
  %1135 = vmatpush1.bf16.msra.mxu0 %v1088
  %1136 = vmatprep.subr.bf16.mxu0 0
  %1137 = vmatpush1.bf16.msra.mxu0 %v1089
  %1138 = vmatprep.subr.bf16.mxu0 0
  %1139 = vmatpush1.bf16.msra.mxu0 0
  %1140 = vmatprep.subr.bf16.mxu0 0
  %1141 = vmatpush1.bf16.msra.mxu0 0
  %1142 = vmatprep.subr.bf16.mxu0 0
  %1143 = vmatpush1.bf16.msra.mxu0 0
  %1144 = vmatprep.subr.bf16.mxu0 0
  %1145 = vmatpush1.bf16.msra.mxu0 0
  %1146 = vmatprep.subr.bf16.mxu0 0
  %1147 = vmatpush1.bf16.msra.mxu0 0
  %1148 = vmatprep.subr.bf16.mxu0 0
  %1149 = vmatpush1.bf16.msra.mxu0 0
  %1150 = vmatprep.mubr.bf16.mxu0 %v1113
  %1151 = vmatmul.mubr.bf16.gmra.mrb[0].mxu0 %v1106
  %v1152 = vpop.f32.mrb[0].mxu0
  %v1153 = vadd.f32 0.0, %v1152
  %v1154 = vpop.f32.mrb[0].mxu0
  %v1155 = vpop.f32.mrb[0].mxu0
  %v1156 = vadd.f32 0.0, %v1155
  %v1157 = vpop.f32.mrb[0].mxu0
  %1158 = vmatprep.mubr.bf16.mxu0 %v1116
  %1159 = vmatmul.mubr.bf16.gmra.mrb[0].mxu0 %v1108
  %v1160 = vpop.f32.mrb[0].mxu0
  %v1161 = vadd.f32 0.0, %v1160
  %v1162 = vpop.f32.mrb[0].mxu0
  %v1163 = vpop.f32.mrb[0].mxu0
  %v1164 = vadd.f32 0.0, %v1163
  %v1165 = vpop.f32.mrb[0].mxu0
  %1166 = vdwg.mxu0
  %v1167 = vld [vmem:[%s12] sm:$0xff]
  %v1168 = vld [vmem:[%s12 + $0x8] sm:$0xff]
  %v1169 = vld [vmem:[%s12 + $0x10] sm:$0xff]
  %v1170 = vld [vmem:[%s12 + $0x18] sm:$0xff]
  %v1171 = vld [vmem:[%s13] sm:$0xff]
  %v1172 = vld [vmem:[%s13 + $0x8] sm:$0xff]
  %v1173 = vld [vmem:[%s13 + $0x10] sm:$0xff]
  %v1174 = vld [vmem:[%s13 + $0x18] sm:$0xff]
  %v1175 = vsel %vm301, %v1153, 0.0
  %1176 = vadd.xlane.f32.xlu0 %v1175
  %v1177 = vpop.xlane.xlu0 %1176
  %v1178 = vsel %vm301, %v1156, 0.0
  %1179 = vadd.xlane.f32.xlu0 %v1178
  %v1180 = vpop.xlane.xlu0 %1179
  %v1181 = vsel %vm301, %v1161, 0.0
  %1182 = vadd.xlane.f32.xlu0 %v1181
  %v1183 = vpop.xlane.xlu0 %1182
  %v1184 = vsel %vm301, %v1164, 0.0
  %1185 = vadd.xlane.f32.xlu0 %v1184
  %v1186 = vpop.xlane.xlu0 %1185
  %v1187 = vmul.f32 %v1177, 0.03125
  %v1188 = vmul.f32 %v1180, 0.03125
  %v1189 = vmul.f32 %v1183, 0.03125
  %v1190 = vmul.f32 %v1186, 0.03125
  %v1191 = vsub.f32 %v1153, %v1187
  %v1192 = vsub.f32 %v1156, %v1188
  %v1193 = vsub.f32 %v1161, %v1189
  %v1194 = vsub.f32 %v1164, %v1190
  %v1195 = vmul.f32 %v1191, %v1191
  %v1196 = vmul.f32 %v1192, %v1192
  %v1197 = vmul.f32 %v1193, %v1193
  %v1198 = vmul.f32 %v1194, %v1194
  %v1199 = vsel %vm301, %v1195, 0.0
  %1200 = vadd.xlane.f32.xlu0 %v1199
  %v1201 = vpop.xlane.xlu0 %1200
  %v1202 = vsel %vm301, %v1196, 0.0
  %1203 = vadd.xlane.f32.xlu0 %v1202
  %v1204 = vpop.xlane.xlu0 %1203
  %v1205 = vsel %vm301, %v1197, 0.0
  %1206 = vadd.xlane.f32.xlu0 %v1205
  %v1207 = vpop.xlane.xlu0 %1206
  %v1208 = vsel %vm301, %v1198, 0.0
  %1209 = vadd.xlane.f32.xlu0 %v1208
  %v1210 = vpop.xlane.xlu0 %1209
  %v1211 = vmul.f32 %v1201, 0.03125
  %v1212 = vmul.f32 %v1204, 0.03125
  %v1213 = vmul.f32 %v1207, 0.03125
  %v1214 = vmul.f32 %v1210, 0.03125
  %v1215 = vadd.f32 %v1211, 1e-05
  %v1216 = vadd.f32 %v1212, 1e-05
  %v1217 = vadd.f32 %v1213, 1e-05
  %v1218 = vadd.f32 %v1214, 1e-05
  %v1219 = vrsqrt.pop %v1215
  %v1220 = vrsqrt.pop %v1216
  %v1221 = vrsqrt.pop %v1217
  %v1222 = vrsqrt.pop %v1218
  %v1223 = vmul.f32 %v1167, %v1219
  %v1224 = vmul.f32 %v1168, %v1220
  %v1225 = vmul.f32 %v1169, %v1221
  %v1226 = vmul.f32 %v1170, %v1222
  %v1227 = vmul.f32 %v1187, %v1223
  %v1228 = vmul.f32 %v1188, %v1224
  %v1229 = vmul.f32 %v1189, %v1225
  %v1230 = vmul.f32 %v1190, %v1226
  %v1231 = vsub.f32 %v1171, %v1227
  %v1232 = vsub.f32 %v1172, %v1228
  %v1233 = vsub.f32 %v1173, %v1229
  %v1234 = vsub.f32 %v1174, %v1230
  %1236 = vset.pattern.permute.xlu0 0
  %1237 = vperm.xlu0 %1236, %v1223
  %v1238 = vpop.permute.xlu0 %1237
  %1241 = vset.pattern.permute.xlu0 0
  %1242 = vperm.xlu0 %1241, %v1224
  %v1243 = vpop.permute.xlu0 %1242
  %1246 = vset.pattern.permute.xlu0 0
  %1247 = vperm.xlu0 %1246, %v1225
  %v1248 = vpop.permute.xlu0 %1247
  %1251 = vset.pattern.permute.xlu0 0
  %1252 = vperm.xlu0 %1251, %v1226
  %v1253 = vpop.permute.xlu0 %1252
  %v1255 = vmul.f32 %v1153, %v1238
  %v1256 = vmul.f32 %v1156, %v1243
  %v1257 = vmul.f32 %v1161, %v1248
  %v1258 = vmul.f32 %v1164, %v1253
  %1260 = vset.pattern.permute.xlu0 0
  %1261 = vperm.xlu0 %1260, %v1231
  %v1262 = vpop.permute.xlu0 %1261
  %1265 = vset.pattern.permute.xlu0 0
  %1266 = vperm.xlu0 %1265, %v1232
  %v1267 = vpop.permute.xlu0 %1266
  %1270 = vset.pattern.permute.xlu0 0
  %1271 = vperm.xlu0 %1270, %v1233
  %v1272 = vpop.permute.xlu0 %1271
  %1275 = vset.pattern.permute.xlu0 0
  %1276 = vperm.xlu0 %1275, %v1234
  %v1277 = vpop.permute.xlu0 %1276
  %v1279 = vadd.f32 %v1255, %v1262
  %v1280 = vadd.f32 %v1256, %v1267
  %v1281 = vadd.f32 %v1257, %v1272
  %v1282 = vadd.f32 %v1258, %v1277
  %v1283 = vmax.f32 %v1279, 0.0
  %v1284 = vmax.f32 %v1280, 0.0
  %v1285 = vmax.f32 %v1281, 0.0
  %v1286 = vmax.f32 %v1282, 0.0
  %1291 = vrot.lane.b32.xlu0 %v1283, 2
  %v1292 = vpop.permute.xlu0 %1291
  %1293 = vrot.lane.b32.xlu0 %v1284, 2
  %v1294 = vpop.permute.xlu0 %1293
  %1295 = vrot.lane.b32.xlu0 %v1285, 2
  %v1296 = vpop.permute.xlu0 %1295
  %1297 = vrot.lane.b32.xlu0 %v1286, 2
  %v1298 = vpop.permute.xlu0 %1297
  %v1303 = vsel %vm108, 0.0, %v1292
  %v1304 = vsel %vm108, 0.0, %v1294
  %v1305 = vsel %vm108, 0.0, %v1296
  %v1306 = vsel %vm108, 0.0, %v1298
  %v1307 = vsel %vm116, %v1303, 0.0
  %v1308 = vsel %vm116, %v1304, 0.0
  %v1309 = vsel %vm116, %v1305, 0.0
  %v1310 = vsel %vm116, %v1306, 0.0
  %1311 = vrot.lane.b32.xlu0 %v1283, 1
  %v1312 = vpop.permute.xlu0 %1311
  %1313 = vrot.lane.b32.xlu0 %v1284, 1
  %v1314 = vpop.permute.xlu0 %1313
  %1315 = vrot.lane.b32.xlu0 %v1285, 1
  %v1316 = vpop.permute.xlu0 %1315
  %1317 = vrot.lane.b32.xlu0 %v1286, 1
  %v1318 = vpop.permute.xlu0 %1317
  %v1323 = vsel %vm121, 0.0, %v1312
  %v1324 = vsel %vm121, 0.0, %v1314
  %v1325 = vsel %vm121, 0.0, %v1316
  %v1326 = vsel %vm121, 0.0, %v1318
  %v1327 = vsel %vm129, %v1323, 0.0
  %v1328 = vsel %vm129, %v1324, 0.0
  %v1329 = vsel %vm129, %v1325, 0.0
  %v1330 = vsel %vm129, %v1326, 0.0
  %1331 = vrot.lane.b32.xlu0 %v1283, 127
  %v1332 = vpop.permute.xlu0 %1331
  %1333 = vrot.lane.b32.xlu0 %v1284, 127
  %v1334 = vpop.permute.xlu0 %1333
  %1335 = vrot.lane.b32.xlu0 %v1285, 127
  %v1336 = vpop.permute.xlu0 %1335
  %1337 = vrot.lane.b32.xlu0 %v1286, 127
  %v1338 = vpop.permute.xlu0 %1337
  %v1343 = vsel %vm134, %v1332, 0.0
  %v1344 = vsel %vm134, %v1334, 0.0
  %v1345 = vsel %vm134, %v1336, 0.0
  %v1346 = vsel %vm134, %v1338, 0.0
  %v1347 = vsel %vm142, %v1343, 0.0
  %v1348 = vsel %vm142, %v1344, 0.0
  %v1349 = vsel %vm142, %v1345, 0.0
  %v1350 = vsel %vm142, %v1346, 0.0
  %1351 = vrot.lane.b32.xlu0 %v1283, 126
  %v1352 = vpop.permute.xlu0 %1351
  %1353 = vrot.lane.b32.xlu0 %v1284, 126
  %v1354 = vpop.permute.xlu0 %1353
  %1355 = vrot.lane.b32.xlu0 %v1285, 126
  %v1356 = vpop.permute.xlu0 %1355
  %1357 = vrot.lane.b32.xlu0 %v1286, 126
  %v1358 = vpop.permute.xlu0 %1357
  %v1363 = vsel %vm147, %v1352, 0.0
  %v1364 = vsel %vm147, %v1354, 0.0
  %v1365 = vsel %vm147, %v1356, 0.0
  %v1366 = vsel %vm147, %v1358, 0.0
  %v1367 = vsel %vm155, %v1363, 0.0
  %v1368 = vsel %vm155, %v1364, 0.0
  %v1369 = vsel %vm155, %v1365, 0.0
  %v1370 = vsel %vm155, %v1366, 0.0
  %v1371 = vpack.c.bf16 %v1308, %v1307
  %v1372 = vpack.c.bf16 %v1310, %v1309
  %v1373 = vpack.c.bf16 %v1328, %v1327
  %v1374 = vpack.c.bf16 %v1330, %v1329
  %v1375 = vpack.c.bf16 %v1284, %v1283
  %v1376 = vpack.c.bf16 %v1286, %v1285
  %v1377 = vpack.c.bf16 %v1348, %v1347
  %v1378 = vpack.c.bf16 %v1350, %v1349
  %v1379 = vpack.c.bf16 %v1368, %v1367
  %v1380 = vpack.c.bf16 %v1370, %v1369
  %v1381 = vld [vmem:[%s14] sm:$0xff]
  %v1382 = vld [vmem:[%s14 + $0x8] sm:$0xff]
  %v1383 = vld [vmem:[%s14 + $0x10] sm:$0xff]
  %v1384 = vld [vmem:[%s14 + $0x18] sm:$0xff]
  %v1389 = vunpack.c.l.b16 %v1381
  %v1390 = vunpack.c.h.b16 %v1381
  %v1391 = vunpack.c.l.b16 %v1382
  %v1392 = vunpack.c.h.b16 %v1382
  %v1393 = vunpack.c.l.b16 %v1383
  %v1394 = vunpack.c.h.b16 %v1383
  %v1395 = vunpack.c.l.b16 %v1384
  %v1396 = vunpack.c.h.b16 %v1384
  %v1397 = vpack.c.b16 %v1391, %v1389
  %v1398 = vpack.c.b16 %v1392, %v1390
  %v1399 = vpack.c.b16 %v1395, %v1393
  %v1400 = vpack.c.b16 %v1396, %v1394
  %v1404 = vsel %vm301, %v1398, 0
  %v1407 = vsel %vm301, %v1400, 0
  %1409 = vmatprep.subr.bf16.mxu0 0
  %1410 = vmatpush1.bf16.msra.mxu0 %v1371
  %1411 = vmatprep.subr.bf16.mxu0 0
  %1412 = vmatpush1.bf16.msra.mxu0 %v1372
  %1413 = vmatprep.subr.bf16.mxu0 0
  %1414 = vmatpush1.bf16.msra.mxu0 %v1373
  %1415 = vmatprep.subr.bf16.mxu0 0
  %1416 = vmatpush1.bf16.msra.mxu0 %v1374
  %1417 = vmatprep.subr.bf16.mxu0 0
  %1418 = vmatpush1.bf16.msra.mxu0 %v1375
  %1419 = vmatprep.subr.bf16.mxu0 0
  %1420 = vmatpush1.bf16.msra.mxu0 %v1376
  %1421 = vmatprep.subr.bf16.mxu0 0
  %1422 = vmatpush1.bf16.msra.mxu0 %v1377
  %1423 = vmatprep.subr.bf16.mxu0 0
  %1424 = vmatpush1.bf16.msra.mxu0 %v1378
  %1425 = vmatprep.subr.bf16.mxu0 0
  %1426 = vmatpush1.bf16.msra.mxu0 %v1379
  %1427 = vmatprep.subr.bf16.mxu0 0
  %1428 = vmatpush1.bf16.msra.mxu0 %v1380
  %1429 = vmatprep.subr.bf16.mxu0 0
  %1430 = vmatpush1.bf16.msra.mxu0 0
  %1431 = vmatprep.subr.bf16.mxu0 0
  %1432 = vmatpush1.bf16.msra.mxu0 0
  %1433 = vmatprep.subr.bf16.mxu0 0
  %1434 = vmatpush1.bf16.msra.mxu0 0
  %1435 = vmatprep.subr.bf16.mxu0 0
  %1436 = vmatpush1.bf16.msra.mxu0 0
  %1437 = vmatprep.subr.bf16.mxu0 0
  %1438 = vmatpush1.bf16.msra.mxu0 0
  %1439 = vmatprep.subr.bf16.mxu0 0
  %1440 = vmatpush1.bf16.msra.mxu0 0
  %1441 = vmatprep.mubr.bf16.mxu0 %v1404
  %1442 = vmatmul.mubr.bf16.gmra.mrb[0].mxu0 %v1397
  %v1443 = vpop.f32.mrb[0].mxu0
  %v1444 = vadd.f32 0.0, %v1443
  %v1445 = vpop.f32.mrb[0].mxu0
  %v1446 = vpop.f32.mrb[0].mxu0
  %v1447 = vadd.f32 0.0, %v1446
  %v1448 = vpop.f32.mrb[0].mxu0
  %1449 = vmatprep.mubr.bf16.mxu0 %v1407
  %1450 = vmatmul.mubr.bf16.gmra.mrb[0].mxu0 %v1399
  %v1451 = vpop.f32.mrb[0].mxu0
  %v1452 = vadd.f32 0.0, %v1451
  %v1453 = vpop.f32.mrb[0].mxu0
  %v1454 = vpop.f32.mrb[0].mxu0
  %v1455 = vadd.f32 0.0, %v1454
  %v1456 = vpop.f32.mrb[0].mxu0
  %1457 = vdwg.mxu0
  %v1458 = vld [vmem:[%s15] sm:$0xff]
  %v1459 = vld [vmem:[%s15 + $0x8] sm:$0xff]
  %v1460 = vld [vmem:[%s15 + $0x10] sm:$0xff]
  %v1461 = vld [vmem:[%s15 + $0x18] sm:$0xff]
  %v1462 = vld [vmem:[%s16] sm:$0xff]
  %v1463 = vld [vmem:[%s16 + $0x8] sm:$0xff]
  %v1464 = vld [vmem:[%s16 + $0x10] sm:$0xff]
  %v1465 = vld [vmem:[%s16 + $0x18] sm:$0xff]
  %v1466 = vsel %vm301, %v1444, 0.0
  %1467 = vadd.xlane.f32.xlu0 %v1466
  %v1468 = vpop.xlane.xlu0 %1467
  %v1469 = vsel %vm301, %v1447, 0.0
  %1470 = vadd.xlane.f32.xlu0 %v1469
  %v1471 = vpop.xlane.xlu0 %1470
  %v1472 = vsel %vm301, %v1452, 0.0
  %1473 = vadd.xlane.f32.xlu0 %v1472
  %v1474 = vpop.xlane.xlu0 %1473
  %v1475 = vsel %vm301, %v1455, 0.0
  %1476 = vadd.xlane.f32.xlu0 %v1475
  %v1477 = vpop.xlane.xlu0 %1476
  %v1478 = vmul.f32 %v1468, 0.03125
  %v1479 = vmul.f32 %v1471, 0.03125
  %v1480 = vmul.f32 %v1474, 0.03125
  %v1481 = vmul.f32 %v1477, 0.03125
  %v1482 = vsub.f32 %v1444, %v1478
  %v1483 = vsub.f32 %v1447, %v1479
  %v1484 = vsub.f32 %v1452, %v1480
  %v1485 = vsub.f32 %v1455, %v1481
  %v1486 = vmul.f32 %v1482, %v1482
  %v1487 = vmul.f32 %v1483, %v1483
  %v1488 = vmul.f32 %v1484, %v1484
  %v1489 = vmul.f32 %v1485, %v1485
  %v1490 = vsel %vm301, %v1486, 0.0
  %1491 = vadd.xlane.f32.xlu0 %v1490
  %v1492 = vpop.xlane.xlu0 %1491
  %v1493 = vsel %vm301, %v1487, 0.0
  %1494 = vadd.xlane.f32.xlu0 %v1493
  %v1495 = vpop.xlane.xlu0 %1494
  %v1496 = vsel %vm301, %v1488, 0.0
  %1497 = vadd.xlane.f32.xlu0 %v1496
  %v1498 = vpop.xlane.xlu0 %1497
  %v1499 = vsel %vm301, %v1489, 0.0
  %1500 = vadd.xlane.f32.xlu0 %v1499
  %v1501 = vpop.xlane.xlu0 %1500
  %v1502 = vmul.f32 %v1492, 0.03125
  %v1503 = vmul.f32 %v1495, 0.03125
  %v1504 = vmul.f32 %v1498, 0.03125
  %v1505 = vmul.f32 %v1501, 0.03125
  %v1506 = vadd.f32 %v1502, 1e-05
  %v1507 = vadd.f32 %v1503, 1e-05
  %v1508 = vadd.f32 %v1504, 1e-05
  %v1509 = vadd.f32 %v1505, 1e-05
  %v1510 = vrsqrt.pop %v1506
  %v1511 = vrsqrt.pop %v1507
  %v1512 = vrsqrt.pop %v1508
  %v1513 = vrsqrt.pop %v1509
  %v1514 = vmul.f32 %v1458, %v1510
  %v1515 = vmul.f32 %v1459, %v1511
  %v1516 = vmul.f32 %v1460, %v1512
  %v1517 = vmul.f32 %v1461, %v1513
  %v1518 = vmul.f32 %v1478, %v1514
  %v1519 = vmul.f32 %v1479, %v1515
  %v1520 = vmul.f32 %v1480, %v1516
  %v1521 = vmul.f32 %v1481, %v1517
  %v1522 = vsub.f32 %v1462, %v1518
  %v1523 = vsub.f32 %v1463, %v1519
  %v1524 = vsub.f32 %v1464, %v1520
  %v1525 = vsub.f32 %v1465, %v1521
  %1527 = vset.pattern.permute.xlu0 0
  %1528 = vperm.xlu0 %1527, %v1514
  %v1529 = vpop.permute.xlu0 %1528
  %1532 = vset.pattern.permute.xlu0 0
  %1533 = vperm.xlu0 %1532, %v1515
  %v1534 = vpop.permute.xlu0 %1533
  %1537 = vset.pattern.permute.xlu0 0
  %1538 = vperm.xlu0 %1537, %v1516
  %v1539 = vpop.permute.xlu0 %1538
  %1542 = vset.pattern.permute.xlu0 0
  %1543 = vperm.xlu0 %1542, %v1517
  %v1544 = vpop.permute.xlu0 %1543
  %v1546 = vmul.f32 %v1444, %v1529
  %v1547 = vmul.f32 %v1447, %v1534
  %v1548 = vmul.f32 %v1452, %v1539
  %v1549 = vmul.f32 %v1455, %v1544
  %1551 = vset.pattern.permute.xlu0 0
  %1552 = vperm.xlu0 %1551, %v1522
  %v1553 = vpop.permute.xlu0 %1552
  %1556 = vset.pattern.permute.xlu0 0
  %1557 = vperm.xlu0 %1556, %v1523
  %v1558 = vpop.permute.xlu0 %1557
  %1561 = vset.pattern.permute.xlu0 0
  %1562 = vperm.xlu0 %1561, %v1524
  %v1563 = vpop.permute.xlu0 %1562
  %1566 = vset.pattern.permute.xlu0 0
  %1567 = vperm.xlu0 %1566, %v1525
  %v1568 = vpop.permute.xlu0 %1567
  %v1570 = vadd.f32 %v1546, %v1553
  %v1571 = vadd.f32 %v1547, %v1558
  %v1572 = vadd.f32 %v1548, %v1563
  %v1573 = vadd.f32 %v1549, %v1568
  %v1574 = vadd.f32 %v992, %v1570
  %v1575 = vadd.f32 %v993, %v1571
  %v1576 = vadd.f32 %v994, %v1572
  %v1577 = vadd.f32 %v995, %v1573
  %1582 = vrot.lane.b32.xlu0 %v1574, 1
  %v1583 = vpop.permute.xlu0 %1582
  %1584 = vrot.lane.b32.xlu0 %v1575, 1
  %v1585 = vpop.permute.xlu0 %1584
  %1586 = vrot.lane.b32.xlu0 %v1576, 1
  %v1587 = vpop.permute.xlu0 %1586
  %1588 = vrot.lane.b32.xlu0 %v1577, 1
  %v1589 = vpop.permute.xlu0 %1588
  %v1594 = vsel %vm121, 0.0, %v1583
  %v1595 = vsel %vm121, 0.0, %v1585
  %v1596 = vsel %vm121, 0.0, %v1587
  %v1597 = vsel %vm121, 0.0, %v1589
  %v1598 = vsel %vm129, %v1594, 0.0
  %v1599 = vsel %vm129, %v1595, 0.0
  %v1600 = vsel %vm129, %v1596, 0.0
  %v1601 = vsel %vm129, %v1597, 0.0
  %1602 = vrot.lane.b32.xlu0 %v1574, 127
  %v1603 = vpop.permute.xlu0 %1602
  %1604 = vrot.lane.b32.xlu0 %v1575, 127
  %v1605 = vpop.permute.xlu0 %1604
  %1606 = vrot.lane.b32.xlu0 %v1576, 127
  %v1607 = vpop.permute.xlu0 %1606
  %1608 = vrot.lane.b32.xlu0 %v1577, 127
  %v1609 = vpop.permute.xlu0 %1608
  %v1614 = vsel %vm134, %v1603, 0.0
  %v1615 = vsel %vm134, %v1605, 0.0
  %v1616 = vsel %vm134, %v1607, 0.0
  %v1617 = vsel %vm134, %v1609, 0.0
  %v1618 = vsel %vm142, %v1614, 0.0
  %v1619 = vsel %vm142, %v1615, 0.0
  %v1620 = vsel %vm142, %v1616, 0.0
  %v1621 = vsel %vm142, %v1617, 0.0
  %v1622 = vpack.c.bf16 %v1599, %v1598
  %v1623 = vpack.c.bf16 %v1601, %v1600
  %v1624 = vpack.c.bf16 %v1575, %v1574
  %v1625 = vpack.c.bf16 %v1577, %v1576
  %v1626 = vpack.c.bf16 %v1619, %v1618
  %v1627 = vpack.c.bf16 %v1621, %v1620
  %v1628 = vld [vmem:[%s17] sm:$0x3]
  %v1629 = vld [vmem:[%s18] sm:$0xf]
  %1631 = vset.pattern.permute.xlu0 0
  %1632 = vperm.xlu0 %1631, %v1629
  %v1633 = vpop.permute.xlu0 %1632
  %vm1635 = vcmask 785408
  %v1637 = vsel %vm1635, %v1628, 0
  %1639 = vmatprep.subr.bf16.mxu0 0
  %1640 = vmatpush1.bf16.msra.mxu0 %v1622
  %1641 = vmatprep.subr.bf16.mxu0 0
  %1642 = vmatpush1.bf16.msra.mxu0 %v1623
  %1643 = vmatprep.subr.bf16.mxu0 0
  %1644 = vmatpush1.bf16.msra.mxu0 %v1624
  %1645 = vmatprep.subr.bf16.mxu0 0
  %1646 = vmatpush1.bf16.msra.mxu0 %v1625
  %1647 = vmatprep.subr.bf16.mxu0 0
  %1648 = vmatpush1.bf16.msra.mxu0 %v1626
  %1649 = vmatprep.subr.bf16.mxu0 0
  %1650 = vmatpush1.bf16.msra.mxu0 %v1627
  %1651 = vmatprep.subr.bf16.mxu0 0
  %1652 = vmatpush1.bf16.msra.mxu0 0
  %1653 = vmatprep.subr.bf16.mxu0 0
  %1654 = vmatpush1.bf16.msra.mxu0 0
  %1655 = vmatprep.subr.bf16.mxu0 0
  %1656 = vmatpush1.bf16.msra.mxu0 0
  %1657 = vmatprep.subr.bf16.mxu0 0
  %1658 = vmatpush1.bf16.msra.mxu0 0
  %1659 = vmatprep.subr.bf16.mxu0 0
  %1660 = vmatpush1.bf16.msra.mxu0 0
  %1661 = vmatprep.subr.bf16.mxu0 0
  %1662 = vmatpush1.bf16.msra.mxu0 0
  %1663 = vmatprep.subr.bf16.mxu0 0
  %1664 = vmatpush1.bf16.msra.mxu0 0
  %1665 = vmatprep.subr.bf16.mxu0 0
  %1666 = vmatpush1.bf16.msra.mxu0 0
  %1667 = vmatprep.subr.bf16.mxu0 0
  %1668 = vmatpush1.bf16.msra.mxu0 0
  %1669 = vmatprep.subr.bf16.mxu0 0
  %1670 = vmatpush1.bf16.msra.mxu0 0
  %1671 = vmatprep.mubr.bf16.mxu0 0
  %1672 = vmatmul.mubr.bf16.gmra.mrb[0].mxu0 %v1637
  %v1673 = vpop.f32.mrb[0].mxu0
  %v1674 = vadd.f32 %v1633, %v1673
  %v1675 = vpop.f32.mrb[0].mxu0
  %v1676 = vpop.f32.mrb[0].mxu0
  %v1677 = vpop.f32.mrb[0].mxu0
  %1678 = vdwg.mxu0
  %vm1679 = vcmask 257024
  %1680 = vst.msk [vmem:[%s19] sm:$0xf] %vm1679, %v1674
  // Predicated region
  $region78: #{resnet1d_forward.1} parent=0 // pred_check
    _
  $region79: #{resnet1d_forward.1} parent=0 // pred_check_branch
    %1682 = sbr.rel (0) target = $region81
  $region80: #{resnet1d_forward.1} parent=0 // pred_region
    _
  $region81: #{resnet1d_forward.1} parent=0 // pred_fallthru
    _
  // Predicated region
  $region82: #{resnet1d_forward.1} parent=0 // pred_check
    _
  $region83: #{resnet1d_forward.1} parent=0 // pred_check_branch
    %1684 = sbr.rel (0) target = $region85
  $region84: #{resnet1d_forward.1} parent=0 // pred_region
    _
  $region85: #{resnet1d_forward.1} parent=0 // pred_fallthru
    _

</llo_original>
